<compile_context>
chip_gen: v6e
topology: v6e:2x2x1
jax: 0.10.0
libtpu: 0.0.40
codegen_flags: <defaults>
</compile_context>

<pallas_src>
import jax
import jax.numpy as jnp
from jax import lax
from jax.experimental import pallas as pl
from jax.experimental.pallas import tpu as pltpu

HIDDEN = 100            # logical PackedEncoderRNN hidden / embedding size
HPAD = 128              # padded hidden dim (lane-dense)
EPAD = 128              # padded embedding dim
NUM_ENC = 5             # look, inv, ob, preva, task
# concat order in forward: (task, look, inv, ob, preva) = obs channels (4,0,1,2,3)
CONCAT_ORDER = (4, 0, 1, 2, 3)


# ---------------------------------------------------------------------------
# Pallas kernels
# ---------------------------------------------------------------------------
def gru_kernel(lens_ref, emb_ref, h0_ref, wih_ref, whh_ref, bx_ref, bhn_ref,
               out_ref, xw_ref):
    """One encoder's packed-GRU recurrence (grid axis = encoder, concat order).

      lens_ref : [5, B]  int32 SMEM (scalar prefetch)  per-row lengths
      emb_ref  : [1, T, B, EPAD]   bf16   embedded tokens, time-major
      h0_ref   : [1, B, HPAD]      f32    initial hidden (padded)
      wih_ref  : [1, EPAD, 3*HPAD] bf16   fused input weights, gates (r,z,n)
      whh_ref  : [1, HPAD, 3*HPAD] bf16   fused hidden weights, gates (r,z,n)
      bx_ref   : [1, 1, 3*HPAD]    f32    [b_ir+b_hr, b_iz+b_hz, b_in]
      bhn_ref  : [1, 1, HPAD]      f32    b_hn (must stay inside r*(.) term)
      out_ref  : [B, HPAD]         bf16   block e of the [B, 5*HPAD] slab
      xw_ref   : [T, B, 3*HPAD]    f32    VMEM scratch for hoisted x-projection
    """
    e = pl.program_id(0)
    T = emb_ref.shape[1]
    B = emb_ref.shape[2]
    EP = emb_ref.shape[3]
    HP3 = wih_ref.shape[2]

    # ---- hoisted input projection: ONE [T*B, EP] x [EP, 3HP] matmul ----
    x2 = emb_ref[0].reshape(T * B, EP)                              # bf16
    xw = jnp.dot(x2, wih_ref[0],
                 preferred_element_type=jnp.float32) + bx_ref[0]    # f32
    xw_ref[...] = xw.reshape(T, B, HP3)

    whh = whh_ref[0]                                                # [HP, 3HP] bf16
    b_hn = bhn_ref[0]                                               # [1, HP]  f32

    # ---- per-row lengths from SMEM scalars -> [B, 1] int32 vector ----
    b_iota = lax.broadcasted_iota(jnp.int32, (B, 1), 0)
    len_vec = jnp.zeros((B, 1), jnp.int32)
    for b in range(B):
        len_vec = jnp.where(b_iota == b, lens_ref[e, b], len_vec)

    def step(t, h):
        xw_t = xw_ref[t]                                            # [B, 3HP] f32
        hw = jnp.dot(h.astype(jnp.bfloat16), whh,
                     preferred_element_type=jnp.float32)            # [B, 3HP]
        r = jax.nn.sigmoid(xw_t[:, 0:HPAD] + hw[:, 0:HPAD])
        z = jax.nn.sigmoid(xw_t[:, HPAD:2 * HPAD] + hw[:, HPAD:2 * HPAD])
        n = jnp.tanh(xw_t[:, 2 * HPAD:] + r * (hw[:, 2 * HPAD:] + b_hn))
        h_new = (1.0 - z) * n + z * h
        # packed-sequence semantics: freeze hidden once past this row's length
        return jnp.where(t < len_vec, h_new, h)

    h_final = lax.fori_loop(0, T, step, h0_ref[0], unroll=True)
    out_ref[...] = h_final.astype(out_ref.dtype)


def fc_kernel(cat_ref, w_ref, b_ref, out_ref):
    """Fused fcx/fch: relu(cat @ [Wx | Wh] + [bx | bh]) in one matmul."""
    out_ref[...] = jnp.maximum(
        jnp.dot(cat_ref[...], w_ref[...],
                preferred_element_type=jnp.float32) + b_ref[...],
        0.0)


# ---------------------------------------------------------------------------
# pallas_call wrappers
# ---------------------------------------------------------------------------
def run_grus(lengths, emb, h0, wih_f, whh_f, bx_f, bhn_f):
    n_enc, T, B, EP = emb.shape
    HP = h0.shape[-1]
    HP3 = wih_f.shape[-1]
    return pl.pallas_call(
        gru_kernel,
        out_shape=jax.ShapeDtypeStruct((B, n_enc * HP), jnp.bfloat16),
        grid_spec=pltpu.PrefetchScalarGridSpec(
            num_scalar_prefetch=1,
            grid=(n_enc,),
            in_specs=[
                pl.BlockSpec((1, T, B, EP), lambda e, lens: (e, 0, 0, 0)),
                pl.BlockSpec((1, B, HP), lambda e, lens: (e, 0, 0)),
                pl.BlockSpec((1, EP, HP3), lambda e, lens: (e, 0, 0)),
                pl.BlockSpec((1, HP, HP3), lambda e, lens: (e, 0, 0)),
                pl.BlockSpec((1, 1, HP3), lambda e, lens: (e, 0, 0)),
                pl.BlockSpec((1, 1, HP), lambda e, lens: (e, 0, 0)),
            ],
            out_specs=pl.BlockSpec((B, HP), lambda e, lens: (0, e)),
            scratch_shapes=[pltpu.VMEM((T, B, HP3), jnp.float32)],
        ),
        compiler_params=pltpu.CompilerParams(
            dimension_semantics=("parallel",)),   # 5 encoders independent
    )(lengths, emb, h0, wih_f, whh_f, bx_f, bhn_f)


def run_fc(cat, wxh, bxh):
    B = cat.shape[0]
    return pl.pallas_call(
        fc_kernel,
        out_shape=jax.ShapeDtypeStruct((B, 2 * HPAD), jnp.float32),
    )(cat, wxh, bxh)


# ---------------------------------------------------------------------------
# Parameter preparation (pad / fuse / bf16-cast / reorder to concat order)
# ---------------------------------------------------------------------------
def prepare_params(p):
    H, HP, EP = HIDDEN, HPAD, EPAD
    order = jnp.array(CONCAT_ORDER)

    emb = jnp.pad(p["emb_tables"][order], ((0, 0), (0, 0), (0, EP - H)))
    emb = emb.astype(jnp.bfloat16)                                  # [5, V, EP]

    def fuse_w(w, rpad):                                            # [5,3,H,H]
        w = jnp.pad(w[order], ((0, 0), (0, 0), (0, rpad - H), (0, HP - H)))
        return jnp.concatenate([w[:, 0], w[:, 1], w[:, 2]], axis=-1)

    wih_f = fuse_w(p["wih"], EP).astype(jnp.bfloat16)               # [5, EP, 3HP]
    whh_f = fuse_w(p["whh"], HP).astype(jnp.bfloat16)               # [5, HP, 3HP]

    bih = p["bih"][order]
    bhh = p["bhh"][order]
    padb = lambda b: jnp.pad(b, ((0, 0), (0, 0), (0, HP - H)))      # [5,1,HP]
    bx_f = jnp.concatenate(
        [padb(bih[:, 0] + bhh[:, 0]),      # r: b_ir + b_hr (pre-added)
         padb(bih[:, 1] + bhh[:, 1]),      # z: b_iz + b_hz (pre-added)
         padb(bih[:, 2])], axis=-1)        # n: b_in (b_hn stays separate)
    bhn_f = padb(bhh[:, 2])                                         # [5, 1, HP]

    # fcx / fch fused into one [5*HP, 2*HP] weight (rows follow the slab layout)
    wxh = jnp.zeros((NUM_ENC * HP, 2 * HP), jnp.float32)
    for i in range(NUM_ENC):
        wxh = wxh.at[i * HP:i * HP + H, 0:H].set(p["wx"][i * H:(i + 1) * H])
        wxh = wxh.at[i * HP:i * HP + H, HP:HP + H].set(p["wh"][i * H:(i + 1) * H])
    wxh = wxh.astype(jnp.bfloat16)
    bxh = jnp.zeros((1, 2 * HP), jnp.float32)
    bxh = bxh.at[0, 0:H].set(p["bx"][0]).at[0, HP:HP + H].set(p["bh"][0])

    return {"emb": emb, "wih_f": wih_f, "whh_f": whh_f, "bx_f": bx_f,
            "bhn_f": bhn_f, "wxh": wxh, "bxh": bxh}


# ---------------------------------------------------------------------------
# Forward pass (glue + kernels)
# ---------------------------------------------------------------------------
def _embed_and_lengths(prep, obs):
    """obs int32 [B,5,T] -> emb [5,T,B,EPAD] bf16 (concat order), lengths [5,B]."""
    tokens = jnp.transpose(obs, (1, 2, 0))[jnp.array(CONCAT_ORDER)]  # [5, T, B]
    emb = jax.vmap(lambda tbl, tok: tbl[tok])(prep["emb"], tokens)   # [5,T,B,EP]
    T = tokens.shape[1]
    pos = jnp.arange(1, T + 1, dtype=jnp.int32)[None, :, None]
    lengths = jnp.max(jnp.where(tokens != 0, pos, 0), axis=1)        # [5, B]
    return emb, lengths.astype(jnp.int32)


def action_drqa_forward(prep, obs, h_state=None):
    """Functional equivalent of ActionDrQA.forward.

    obs: int32 [B, 5, T] token ids.  Returns (x [B,100], h [1,B,100]).
    h_state (optional): [5, B, 100] f32 in original encoder order.
    """
    B = obs.shape[0]
    emb, lengths = _embed_and_lengths(prep, obs)
    if h_state is None:
        h0 = jnp.zeros((NUM_ENC, B, HPAD), jnp.float32)              # initHidden
    else:
        h0 = jnp.pad(h_state[jnp.array(CONCAT_ORDER)],
                     ((0, 0), (0, 0), (0, HPAD - HIDDEN)))

    # GRU encoders write straight into the concat slab [B, 5*HPAD] (bf16).
    cat = run_grus(lengths, emb, h0, prep["wih_f"], prep["whh_f"],
                   prep["bx_f"], prep["bhn_f"])
    out = run_fc(cat, prep["wxh"], prep["bxh"])                      # [B, 2*HPAD]
    x = out[:, :HIDDEN]
    h = out[:, HPAD:HPAD + HIDDEN]
    return x, h[None]                                                # [B,100],[1,B,100]


# ---------------------------------------------------------------------------
# Pure-JAX f32 reference (raw, un-fused parameters)
# ---------------------------------------------------------------------------
def _embed_and_mask_ref(params, obs):
    B, n_enc, T = obs.shape
    tokens = jnp.transpose(obs, (1, 2, 0))                           # [5, T, B]
    emb = jax.vmap(lambda tbl, tok: tbl[tok])(params["emb_tables"], tokens)
    nz = (tokens != 0)
    lengths = jnp.max(nz * jnp.arange(1, T + 1)[None, :, None], axis=1)
    mask = (jnp.arange(T)[None, :, None] < lengths[:, None, :]
            ).astype(jnp.float32)[..., None]
    return emb.astype(jnp.float32), mask


def reference_forward(params, obs):
    B = obs.shape[0]
    emb, mask = _embed_and_mask_ref(params, obs)
    T = emb.shape[1]
    hs = []
    for e in range(NUM_ENC):
        h = jnp.zeros((B, HIDDEN), jnp.float32)
        for t in range(T):
            x = emb[e, t]
            m = mask[e, t]
            r = jax.nn.sigmoid(x @ params["wih"][e, 0] + params["bih"][e, 0]
                               + h @ params["whh"][e, 0] + params["bhh"][e, 0])
            z = jax.nn.sigmoid(x @ params["wih"][e, 1] + params["bih"][e, 1]
                               + h @ params["whh"][e, 1] + params["bhh"][e, 1])
            n = jnp.tanh(x @ params["wih"][e, 2] + params["bih"][e, 2]
                         + r * (h @ params["whh"][e, 2] + params["bhh"][e, 2]))
            h_new = (1.0 - z) * n + z * h
            h = m * h_new + (1.0 - m) * h
        hs.append(h)
    hs = jnp.stack(hs)
    cat = jnp.concatenate([hs[i] for i in CONCAT_ORDER], axis=1)
    x = jax.nn.relu(cat @ params["wx"] + params["bx"])
    h = jax.nn.relu(cat @ params["wh"] + params["bh"])
    return x, h[None]


# ---------------------------------------------------------------------------
# Deterministic parameter init (synthetic; PyTorch-shaped)
# ---------------------------------------------------------------------------
def init_params(key, vocab_size):
    H = HIDDEN
    ks = jax.random.split(key, 10)
    scale = 0.1
    return {
        "emb_tables": scale * jax.random.normal(ks[0], (NUM_ENC, vocab_size, H),
                                                jnp.float32),
        # GRU weights, gate order (r, z, n); stored transposed ([in, out])
        "wih": scale * jax.random.normal(ks[1], (NUM_ENC, 3, H, H), jnp.float32),
        "whh": scale * jax.random.normal(ks[2], (NUM_ENC, 3, H, H), jnp.float32),
        "bih": scale * jax.random.normal(ks[3], (NUM_ENC, 3, 1, H), jnp.float32),
        "bhh": scale * jax.random.normal(ks[4], (NUM_ENC, 3, 1, H), jnp.float32),
        # fcx / fch : Linear(500, 100)
        "wx": scale * jax.random.normal(ks[5], (NUM_ENC * H, H), jnp.float32),
        "bx": scale * jax.random.normal(ks[6], (1, H), jnp.float32),
        "wh": scale * jax.random.normal(ks[7], (NUM_ENC * H, H), jnp.float32),
        "bh": scale * jax.random.normal(ks[8], (1, H), jnp.float32),
        # NOTE: ActionDrQA.__init__'s self.embeddings is unused in forward.
    }


if __name__ == "__main__":
    key = jax.random.PRNGKey(0)
    k_obs, k_len, k_par = jax.random.split(key, 3)

    B, T, VOCAB = 2, 8, 50
    # token ids in [1, VOCAB); zero out trailing positions to exercise packing
    obs = jax.random.randint(k_obs, (B, NUM_ENC, T), 1, VOCAB, dtype=jnp.int32)
    lengths = jax.random.randint(k_len, (B, NUM_ENC), 3, T + 1, dtype=jnp.int32)
    pad_mask = jnp.arange(T)[None, None, :] < lengths[:, :, None]
    obs = jnp.where(pad_mask, obs, 0)

    params = init_params(k_par, VOCAB)
    prep = prepare_params(params)

    fwd = jax.jit(action_drqa_forward)
    x, h = fwd(prep, obs)
    x, h = jax.block_until_ready((x, h))

    x_ref, h_ref = reference_forward(params, obs)
    assert x.shape == (B, HIDDEN) and h.shape == (1, B, HIDDEN)
    # bf16 MXU operands (f32 accumulation) vs. the pure-f32 reference: tolerance
    # relaxed accordingly; structural bugs would show O(0.1..1) errors.
    assert jnp.allclose(x, x_ref, atol=3e-2, rtol=3e-2)
    assert jnp.allclose(h, h_ref, atol=3e-2, rtol=3e-2)

    print("KERNEL_OK")
</pallas_src>

<mosaic_0001>
module attributes {stable_mosaic.version = 11 : i64} {
  func.func @fc_kernel(%arg0: memref<2x640xbf16, #tpu.memory_space<vmem>>, %arg1: memref<640x256xbf16, #tpu.memory_space<vmem>>, %arg2: memref<1x256xf32, #tpu.memory_space<vmem>>, %arg3: memref<2x256xf32, #tpu.memory_space<vmem>>) attributes {dimension_semantics = [], scalar_prefetch = 0 : i64, scratch_operands = 0 : i64, tpu.core_type = #tpu.core_type<tc>} {
    %c0 = arith.constant 0 : index
    %c0_0 = arith.constant 0 : index
    %0 = vector.load %arg0[%c0, %c0_0] : memref<2x640xbf16, #tpu.memory_space<vmem>>, vector<2x640xbf16>
    %c0_1 = arith.constant 0 : index
    %c0_2 = arith.constant 0 : index
    %1 = vector.load %arg1[%c0_1, %c0_2] : memref<640x256xbf16, #tpu.memory_space<vmem>>, vector<640x256xbf16>
    %cst = arith.constant dense<0.000000e+00> : vector<2x256xf32>
    %2 = tpu.matmul %0, %1, %cst {dimension_numbers = #tpu.dot_dimension_numbers<[1], [0], [0], [1], [0, 0, 1, 1], [], []>} : vector<2x640xbf16>, vector<640x256xbf16>, vector<2x256xf32> -> vector<2x256xf32>
    %c0_3 = arith.constant 0 : index
    %c0_4 = arith.constant 0 : index
    %3 = vector.load %arg2[%c0_3, %c0_4] : memref<1x256xf32, #tpu.memory_space<vmem>>, vector<1x256xf32>
    %4 = vector.broadcast %3 : vector<1x256xf32> to vector<2x256xf32>
    %5 = arith.addf %2, %4 : vector<2x256xf32>
    %cst_5 = arith.constant 0.000000e+00 : f32
    %6 = vector.broadcast %cst_5 : f32 to vector<2x256xf32>
    %7 = arith.maximumf %5, %6 : vector<2x256xf32>
    %c0_6 = arith.constant 0 : index
    %c0_7 = arith.constant 0 : index
    %8 = vector.load %arg3[%c0_6, %c0_7] : memref<2x256xf32, #tpu.memory_space<vmem>>, vector<2x256xf32>
    tpu.vector_store %arg3[%c0_6, %c0_7], %7 {strides = array<i32>} : memref<2x256xf32, #tpu.memory_space<vmem>>, vector<2x256xf32>,
    return
  }
}

module attributes {stable_mosaic.version = 11 : i64} {
  func.func @gru_kernel(%arg0: i32, %arg1: memref<5x2xi32, #tpu.memory_space<smem>>, %arg2: memref<1x8x2x128xbf16, #tpu.memory_space<vmem>>, %arg3: memref<1x2x128xf32, #tpu.memory_space<vmem>>, %arg4: memref<1x128x384xbf16, #tpu.memory_space<vmem>>, %arg5: memref<1x128x384xbf16, #tpu.memory_space<vmem>>, %arg6: memref<1x1x384xf32, #tpu.memory_space<vmem>>, %arg7: memref<1x1x128xf32, #tpu.memory_space<vmem>>, %arg8: memref<2x128xbf16, #tpu.memory_space<vmem>>, %arg9: memref<8x2x384xf32, #tpu.memory_space<vmem>>) attributes {dimension_semantics = [#tpu.dimension_semantics<parallel>], iteration_bounds = array<i64: 5>, scalar_prefetch = 1 : i64, scratch_operands = 1 : i64, tpu.core_type = #tpu.core_type<tc>, window_params = [{transform_indices = @transform_0, window_bounds = array<i64: 1, 8, 2, 128>}, {transform_indices = @transform_1, window_bounds = array<i64: 1, 2, 128>}, {transform_indices = @transform_2, window_bounds = array<i64: 1, 128, 384>}, {transform_indices = @transform_3, window_bounds = array<i64: 1, 128, 384>}, {transform_indices = @transform_4, window_bounds = array<i64: 1, 1, 384>}, {transform_indices = @transform_5, window_bounds = array<i64: 1, 1, 128>}, {transform_indices = @transform_6, window_bounds = array<i64: 2, 128>}]} {
    %c0 = arith.constant 0 : index
    %c0_0 = arith.constant 0 : index
    %c0_1 = arith.constant 0 : index
    %c0_2 = arith.constant 0 : index
    %0 = vector.load %arg2[%c0, %c0_0, %c0_1, %c0_2] : memref<1x8x2x128xbf16, #tpu.memory_space<vmem>>, vector<1x8x2x128xbf16>
    %1 = vector.shape_cast %0 : vector<1x8x2x128xbf16> to vector<8x2x128xbf16>
    %2 = vector.shape_cast %1 : vector<8x2x128xbf16> to vector<16x128xbf16>
    %c0_3 = arith.constant 0 : index
    %c0_4 = arith.constant 0 : index
    %c0_5 = arith.constant 0 : index
    %3 = vector.load %arg4[%c0_3, %c0_4, %c0_5] : memref<1x128x384xbf16, #tpu.memory_space<vmem>>, vector<1x128x384xbf16>
    %4 = vector.shape_cast %3 : vector<1x128x384xbf16> to vector<128x384xbf16>
    %cst = arith.constant dense<0.000000e+00> : vector<16x384xf32>
    %5 = tpu.matmul %2, %4, %cst {dimension_numbers = #tpu.dot_dimension_numbers<[1], [0], [0], [1], [0, 0, 1, 1], [], []>} : vector<16x128xbf16>, vector<128x384xbf16>, vector<16x384xf32> -> vector<16x384xf32>
    %c0_6 = arith.constant 0 : index
    %c0_7 = arith.constant 0 : index
    %c0_8 = arith.constant 0 : index
    %6 = vector.load %arg6[%c0_6, %c0_7, %c0_8] : memref<1x1x384xf32, #tpu.memory_space<vmem>>, vector<1x1x384xf32>
    %7 = vector.shape_cast %6 : vector<1x1x384xf32> to vector<1x384xf32>
    %8 = vector.broadcast %7 : vector<1x384xf32> to vector<16x384xf32>
    %9 = arith.addf %5, %8 : vector<16x384xf32>
    %10 = vector.shape_cast %9 : vector<16x384xf32> to vector<8x2x384xf32>
    %c0_9 = arith.constant 0 : index
    %c0_10 = arith.constant 0 : index
    %c0_11 = arith.constant 0 : index
    %11 = vector.load %arg9[%c0_9, %c0_10, %c0_11] : memref<8x2x384xf32, #tpu.memory_space<vmem>>, vector<8x2x384xf32>
    tpu.vector_store %arg9[%c0_9, %c0_10, %c0_11], %10 {strides = array<i32>} : memref<8x2x384xf32, #tpu.memory_space<vmem>>, vector<8x2x384xf32>,
    %c0_12 = arith.constant 0 : index
    %c0_13 = arith.constant 0 : index
    %c0_14 = arith.constant 0 : index
    %12 = vector.load %arg5[%c0_12, %c0_13, %c0_14] : memref<1x128x384xbf16, #tpu.memory_space<vmem>>, vector<1x128x384xbf16>
    %13 = vector.shape_cast %12 : vector<1x128x384xbf16> to vector<128x384xbf16>
    %c0_15 = arith.constant 0 : index
    %c0_16 = arith.constant 0 : index
    %c0_17 = arith.constant 0 : index
    %14 = vector.load %arg7[%c0_15, %c0_16, %c0_17] : memref<1x1x128xf32, #tpu.memory_space<vmem>>, vector<1x1x128xf32>
    %15 = vector.shape_cast %14 : vector<1x1x128xf32> to vector<1x128xf32>
    %16 = tpu.iota {dimensions = array<i32: 0>} : vector<2x1xi32>
    %c0_i32 = arith.constant 0 : i32
    %17 = vector.broadcast %c0_i32 : i32 to vector<2x1xi32>
    %c0_i32_18 = arith.constant 0 : i32
    %18 = vector.broadcast %c0_i32_18 : i32 to vector<2x1xi32>
    %19 = arith.cmpi eq, %16, %18 : vector<2x1xi32>
    %20 = arith.index_cast %arg0 : i32 to index
    %c0_19 = arith.constant 0 : index
    %21 = memref.load %arg1[%20, %c0_19] : memref<5x2xi32, #tpu.memory_space<smem>>
    %22 = vector.broadcast %21 : i32 to vector<2x1xi32>
    %23 = arith.select %19, %22, %17 : vector<2x1xi1>, vector<2x1xi32>
    %c1_i32 = arith.constant 1 : i32
    %24 = vector.broadcast %c1_i32 : i32 to vector<2x1xi32>
    %25 = arith.cmpi eq, %16, %24 : vector<2x1xi32>
    %26 = arith.index_cast %arg0 : i32 to index
    %c1 = arith.constant 1 : index
    %27 = memref.load %arg1[%26, %c1] : memref<5x2xi32, #tpu.memory_space<smem>>
    %28 = vector.broadcast %27 : i32 to vector<2x1xi32>
    %29 = arith.select %25, %28, %23 : vector<2x1xi1>, vector<2x1xi32>
    %c0_20 = arith.constant 0 : index
    %c0_21 = arith.constant 0 : index
    %c0_22 = arith.constant 0 : index
    %30 = vector.load %arg3[%c0_20, %c0_21, %c0_22] : memref<1x2x128xf32, #tpu.memory_space<vmem>>, vector<1x2x128xf32>
    %31 = vector.shape_cast %30 : vector<1x2x128xf32> to vector<2x128xf32>
    %c0_i32_23 = arith.constant 0 : i32
    %32 = arith.index_cast %c0_i32_23 : i32 to index
    %c0_24 = arith.constant 0 : index
    %c0_25 = arith.constant 0 : index
    %33 = vector.load %arg9[%32, %c0_24, %c0_25] : memref<8x2x384xf32, #tpu.memory_space<vmem>>, vector<1x2x384xf32>
    %34 = vector.shape_cast %33 : vector<1x2x384xf32> to vector<2x384xf32>
    %35 = arith.truncf %31 : vector<2x128xf32> to vector<2x128xbf16>
    %cst_26 = arith.constant dense<0.000000e+00> : vector<2x384xf32>
    %36 = tpu.matmul %35, %13, %cst_26 {dimension_numbers = #tpu.dot_dimension_numbers<[1], [0], [0], [1], [0, 0, 1, 1], [], []>} : vector<2x128xbf16>, vector<128x384xbf16>, vector<2x384xf32> -> vector<2x384xf32>
    %37 = vector.extract_strided_slice %34 {offsets = [0, 0], sizes = [2, 128], strides = [1, 1]} : vector<2x384xf32> to vector<2x128xf32>
    %38 = vector.extract_strided_slice %36 {offsets = [0, 0], sizes = [2, 128], strides = [1, 1]} : vector<2x384xf32> to vector<2x128xf32>
    %39 = arith.addf %37, %38 : vector<2x128xf32>
    %40 = arith.negf %39 : vector<2x128xf32>
    %41 = math.exp %40 : vector<2x128xf32>
    %cst_27 = arith.constant 1.000000e+00 : f32
    %42 = vector.broadcast %cst_27 : f32 to vector<2x128xf32>
    %43 = arith.addf %42, %41 : vector<2x128xf32>
    %44 = arith.divf %42, %43 : vector<2x128xf32>
    %45 = vector.extract_strided_slice %34 {offsets = [0, 128], sizes = [2, 128], strides = [1, 1]} : vector<2x384xf32> to vector<2x128xf32>
    %46 = vector.extract_strided_slice %36 {offsets = [0, 128], sizes = [2, 128], strides = [1, 1]} : vector<2x384xf32> to vector<2x128xf32>
    %47 = arith.addf %45, %46 : vector<2x128xf32>
    %48 = arith.negf %47 : vector<2x128xf32>
    %49 = math.exp %48 : vector<2x128xf32>
    %cst_28 = arith.constant 1.000000e+00 : f32
    %50 = vector.broadcast %cst_28 : f32 to vector<2x128xf32>
    %51 = arith.addf %50, %49 : vector<2x128xf32>
    %52 = arith.divf %50, %51 : vector<2x128xf32>
    %53 = vector.extract_strided_slice %34 {offsets = [0, 256], sizes = [2, 128], strides = [1, 1]} : vector<2x384xf32> to vector<2x128xf32>
    %54 = vector.extract_strided_slice %36 {offsets = [0, 256], sizes = [2, 128], strides = [1, 1]} : vector<2x384xf32> to vector<2x128xf32>
    %55 = vector.broadcast %15 : vector<1x128xf32> to vector<2x128xf32>
    %56 = arith.addf %54, %55 : vector<2x128xf32>
    %57 = arith.mulf %44, %56 : vector<2x128xf32>
    %58 = arith.addf %53, %57 : vector<2x128xf32>
    %59 = math.tanh %58 : vector<2x128xf32>
    %cst_29 = arith.constant 1.000000e+00 : f32
    %60 = vector.broadcast %cst_29 : f32 to vector<2x128xf32>
    %61 = arith.subf %60, %52 : vector<2x128xf32>
    %62 = arith.mulf %61, %59 : vector<2x128xf32>
    %63 = arith.mulf %52, %31 : vector<2x128xf32>
    %64 = arith.addf %62, %63 : vector<2x128xf32>
    %65 = vector.broadcast %c0_i32_23 : i32 to vector<2x1xi32>
    %66 = arith.cmpi slt, %65, %29 : vector<2x1xi32>
    %67 = vector.shape_cast %66 : vector<2x1xi1> to vector<2x1xi1>
    %68 = vector.broadcast %67 : vector<2x1xi1> to vector<2x128xi1>
    %69 = arith.select %68, %64, %31 : vector<2x128xi1>, vector<2x128xf32>
    %c1_i32_30 = arith.constant 1 : i32
    %70 = arith.index_cast %c1_i32_30 : i32 to index
    %c0_31 = arith.constant 0 : index
    %c0_32 = arith.constant 0 : index
    %71 = vector.load %arg9[%70, %c0_31, %c0_32] : memref<8x2x384xf32, #tpu.memory_space<vmem>>, vector<1x2x384xf32>
    %72 = vector.shape_cast %71 : vector<1x2x384xf32> to vector<2x384xf32>
    %73 = arith.truncf %69 : vector<2x128xf32> to vector<2x128xbf16>
    %cst_33 = arith.constant dense<0.000000e+00> : vector<2x384xf32>
    %74 = tpu.matmul %73, %13, %cst_33 {dimension_numbers = #tpu.dot_dimension_numbers<[1], [0], [0], [1], [0, 0, 1, 1], [], []>} : vector<2x128xbf16>, vector<128x384xbf16>, vector<2x384xf32> -> vector<2x384xf32>
    %75 = vector.extract_strided_slice %72 {offsets = [0, 0], sizes = [2, 128], strides = [1, 1]} : vector<2x384xf32> to vector<2x128xf32>
    %76 = vector.extract_strided_slice %74 {offsets = [0, 0], sizes = [2, 128], strides = [1, 1]} : vector<2x384xf32> to vector<2x128xf32>
    %77 = arith.addf %75, %76 : vector<2x128xf32>
    %78 = arith.negf %77 : vector<2x128xf32>
    %79 = math.exp %78 : vector<2x128xf32>
    %cst_34 = arith.constant 1.000000e+00 : f32
    %80 = vector.broadcast %cst_34 : f32 to vector<2x128xf32>
    %81 = arith.addf %80, %79 : vector<2x128xf32>
    %82 = arith.divf %80, %81 : vector<2x128xf32>
    %83 = vector.extract_strided_slice %72 {offsets = [0, 128], sizes = [2, 128], strides = [1, 1]} : vector<2x384xf32> to vector<2x128xf32>
    %84 = vector.extract_strided_slice %74 {offsets = [0, 128], sizes = [2, 128], strides = [1, 1]} : vector<2x384xf32> to vector<2x128xf32>
    %85 = arith.addf %83, %84 : vector<2x128xf32>
    %86 = arith.negf %85 : vector<2x128xf32>
    %87 = math.exp %86 : vector<2x128xf32>
    %cst_35 = arith.constant 1.000000e+00 : f32
    %88 = vector.broadcast %cst_35 : f32 to vector<2x128xf32>
    %89 = arith.addf %88, %87 : vector<2x128xf32>
    %90 = arith.divf %88, %89 : vector<2x128xf32>
    %91 = vector.extract_strided_slice %72 {offsets = [0, 256], sizes = [2, 128], strides = [1, 1]} : vector<2x384xf32> to vector<2x128xf32>
    %92 = vector.extract_strided_slice %74 {offsets = [0, 256], sizes = [2, 128], strides = [1, 1]} : vector<2x384xf32> to vector<2x128xf32>
    %93 = vector.broadcast %15 : vector<1x128xf32> to vector<2x128xf32>
    %94 = arith.addf %92, %93 : vector<2x128xf32>
    %95 = arith.mulf %82, %94 : vector<2x128xf32>
    %96 = arith.addf %91, %95 : vector<2x128xf32>
    %97 = math.tanh %96 : vector<2x128xf32>
    %cst_36 = arith.constant 1.000000e+00 : f32
    %98 = vector.broadcast %cst_36 : f32 to vector<2x128xf32>
    %99 = arith.subf %98, %90 : vector<2x128xf32>
    %100 = arith.mulf %99, %97 : vector<2x128xf32>
    %101 = arith.mulf %90, %69 : vector<2x128xf32>
    %102 = arith.addf %100, %101 : vector<2x128xf32>
    %103 = vector.broadcast %c1_i32_30 : i32 to vector<2x1xi32>
    %104 = arith.cmpi slt, %103, %29 : vector<2x1xi32>
    %105 = vector.shape_cast %104 : vector<2x1xi1> to vector<2x1xi1>
    %106 = vector.broadcast %105 : vector<2x1xi1> to vector<2x128xi1>
    %107 = arith.select %106, %102, %69 : vector<2x128xi1>, vector<2x128xf32>
    %c2_i32 = arith.constant 2 : i32
    %108 = arith.index_cast %c2_i32 : i32 to index
    %c0_37 = arith.constant 0 : index
    %c0_38 = arith.constant 0 : index
    %109 = vector.load %arg9[%108, %c0_37, %c0_38] : memref<8x2x384xf32, #tpu.memory_space<vmem>>, vector<1x2x384xf32>
    %110 = vector.shape_cast %109 : vector<1x2x384xf32> to vector<2x384xf32>
    %111 = arith.truncf %107 : vector<2x128xf32> to vector<2x128xbf16>
    %cst_39 = arith.constant dense<0.000000e+00> : vector<2x384xf32>
    %112 = tpu.matmul %111, %13, %cst_39 {dimension_numbers = #tpu.dot_dimension_numbers<[1], [0], [0], [1], [0, 0, 1, 1], [], []>} : vector<2x128xbf16>, vector<128x384xbf16>, vector<2x384xf32> -> vector<2x384xf32>
    %113 = vector.extract_strided_slice %110 {offsets = [0, 0], sizes = [2, 128], strides = [1, 1]} : vector<2x384xf32> to vector<2x128xf32>
    %114 = vector.extract_strided_slice %112 {offsets = [0, 0], sizes = [2, 128], strides = [1, 1]} : vector<2x384xf32> to vector<2x128xf32>
    %115 = arith.addf %113, %114 : vector<2x128xf32>
    %116 = arith.negf %115 : vector<2x128xf32>
    %117 = math.exp %116 : vector<2x128xf32>
    %cst_40 = arith.constant 1.000000e+00 : f32
    %118 = vector.broadcast %cst_40 : f32 to vector<2x128xf32>
    %119 = arith.addf %118, %117 : vector<2x128xf32>
    %120 = arith.divf %118, %119 : vector<2x128xf32>
    %121 = vector.extract_strided_slice %110 {offsets = [0, 128], sizes = [2, 128], strides = [1, 1]} : vector<2x384xf32> to vector<2x128xf32>
    %122 = vector.extract_strided_slice %112 {offsets = [0, 128], sizes = [2, 128], strides = [1, 1]} : vector<2x384xf32> to vector<2x128xf32>
    %123 = arith.addf %121, %122 : vector<2x128xf32>
    %124 = arith.negf %123 : vector<2x128xf32>
    %125 = math.exp %124 : vector<2x128xf32>
    %cst_41 = arith.constant 1.000000e+00 : f32
    %126 = vector.broadcast %cst_41 : f32 to vector<2x128xf32>
    %127 = arith.addf %126, %125 : vector<2x128xf32>
    %128 = arith.divf %126, %127 : vector<2x128xf32>
    %129 = vector.extract_strided_slice %110 {offsets = [0, 256], sizes = [2, 128], strides = [1, 1]} : vector<2x384xf32> to vector<2x128xf32>
    %130 = vector.extract_strided_slice %112 {offsets = [0, 256], sizes = [2, 128], strides = [1, 1]} : vector<2x384xf32> to vector<2x128xf32>
    %131 = vector.broadcast %15 : vector<1x128xf32> to vector<2x128xf32>
    %132 = arith.addf %130, %131 : vector<2x128xf32>
    %133 = arith.mulf %120, %132 : vector<2x128xf32>
    %134 = arith.addf %129, %133 : vector<2x128xf32>
    %135 = math.tanh %134 : vector<2x128xf32>
    %cst_42 = arith.constant 1.000000e+00 : f32
    %136 = vector.broadcast %cst_42 : f32 to vector<2x128xf32>
    %137 = arith.subf %136, %128 : vector<2x128xf32>
    %138 = arith.mulf %137, %135 : vector<2x128xf32>
    %139 = arith.mulf %128, %107 : vector<2x128xf32>
    %140 = arith.addf %138, %139 : vector<2x128xf32>
    %141 = vector.broadcast %c2_i32 : i32 to vector<2x1xi32>
    %142 = arith.cmpi slt, %141, %29 : vector<2x1xi32>
    %143 = vector.shape_cast %142 : vector<2x1xi1> to vector<2x1xi1>
    %144 = vector.broadcast %143 : vector<2x1xi1> to vector<2x128xi1>
    %145 = arith.select %144, %140, %107 : vector<2x128xi1>, vector<2x128xf32>
    %c3_i32 = arith.constant 3 : i32
    %146 = arith.index_cast %c3_i32 : i32 to index
    %c0_43 = arith.constant 0 : index
    %c0_44 = arith.constant 0 : index
    %147 = vector.load %arg9[%146, %c0_43, %c0_44] : memref<8x2x384xf32, #tpu.memory_space<vmem>>, vector<1x2x384xf32>
    %148 = vector.shape_cast %147 : vector<1x2x384xf32> to vector<2x384xf32>
    %149 = arith.truncf %145 : vector<2x128xf32> to vector<2x128xbf16>
    %cst_45 = arith.constant dense<0.000000e+00> : vector<2x384xf32>
    %150 = tpu.matmul %149, %13, %cst_45 {dimension_numbers = #tpu.dot_dimension_numbers<[1], [0], [0], [1], [0, 0, 1, 1], [], []>} : vector<2x128xbf16>, vector<128x384xbf16>, vector<2x384xf32> -> vector<2x384xf32>
    %151 = vector.extract_strided_slice %148 {offsets = [0, 0], sizes = [2, 128], strides = [1, 1]} : vector<2x384xf32> to vector<2x128xf32>
    %152 = vector.extract_strided_slice %150 {offsets = [0, 0], sizes = [2, 128], strides = [1, 1]} : vector<2x384xf32> to vector<2x128xf32>
    %153 = arith.addf %151, %152 : vector<2x128xf32>
    %154 = arith.negf %153 : vector<2x128xf32>
    %155 = math.exp %154 : vector<2x128xf32>
    %cst_46 = arith.constant 1.000000e+00 : f32
    %156 = vector.broadcast %cst_46 : f32 to vector<2x128xf32>
    %157 = arith.addf %156, %155 : vector<2x128xf32>
    %158 = arith.divf %156, %157 : vector<2x128xf32>
    %159 = vector.extract_strided_slice %148 {offsets = [0, 128], sizes = [2, 128], strides = [1, 1]} : vector<2x384xf32> to vector<2x128xf32>
    %160 = vector.extract_strided_slice %150 {offsets = [0, 128], sizes = [2, 128], strides = [1, 1]} : vector<2x384xf32> to vector<2x128xf32>
    %161 = arith.addf %159, %160 : vector<2x128xf32>
    %162 = arith.negf %161 : vector<2x128xf32>
    %163 = math.exp %162 : vector<2x128xf32>
    %cst_47 = arith.constant 1.000000e+00 : f32
    %164 = vector.broadcast %cst_47 : f32 to vector<2x128xf32>
    %165 = arith.addf %164, %163 : vector<2x128xf32>
    %166 = arith.divf %164, %165 : vector<2x128xf32>
    %167 = vector.extract_strided_slice %148 {offsets = [0, 256], sizes = [2, 128], strides = [1, 1]} : vector<2x384xf32> to vector<2x128xf32>
    %168 = vector.extract_strided_slice %150 {offsets = [0, 256], sizes = [2, 128], strides = [1, 1]} : vector<2x384xf32> to vector<2x128xf32>
    %169 = vector.broadcast %15 : vector<1x128xf32> to vector<2x128xf32>
    %170 = arith.addf %168, %169 : vector<2x128xf32>
    %171 = arith.mulf %158, %170 : vector<2x128xf32>
    %172 = arith.addf %167, %171 : vector<2x128xf32>
    %173 = math.tanh %172 : vector<2x128xf32>
    %cst_48 = arith.constant 1.000000e+00 : f32
    %174 = vector.broadcast %cst_48 : f32 to vector<2x128xf32>
    %175 = arith.subf %174, %166 : vector<2x128xf32>
    %176 = arith.mulf %175, %173 : vector<2x128xf32>
    %177 = arith.mulf %166, %145 : vector<2x128xf32>
    %178 = arith.addf %176, %177 : vector<2x128xf32>
    %179 = vector.broadcast %c3_i32 : i32 to vector<2x1xi32>
    %180 = arith.cmpi slt, %179, %29 : vector<2x1xi32>
    %181 = vector.shape_cast %180 : vector<2x1xi1> to vector<2x1xi1>
    %182 = vector.broadcast %181 : vector<2x1xi1> to vector<2x128xi1>
    %183 = arith.select %182, %178, %145 : vector<2x128xi1>, vector<2x128xf32>
    %c4_i32 = arith.constant 4 : i32
    %184 = arith.index_cast %c4_i32 : i32 to index
    %c0_49 = arith.constant 0 : index
    %c0_50 = arith.constant 0 : index
    %185 = vector.load %arg9[%184, %c0_49, %c0_50] : memref<8x2x384xf32, #tpu.memory_space<vmem>>, vector<1x2x384xf32>
    %186 = vector.shape_cast %185 : vector<1x2x384xf32> to vector<2x384xf32>
    %187 = arith.truncf %183 : vector<2x128xf32> to vector<2x128xbf16>
    %cst_51 = arith.constant dense<0.000000e+00> : vector<2x384xf32>
    %188 = tpu.matmul %187, %13, %cst_51 {dimension_numbers = #tpu.dot_dimension_numbers<[1], [0], [0], [1], [0, 0, 1, 1], [], []>} : vector<2x128xbf16>, vector<128x384xbf16>, vector<2x384xf32> -> vector<2x384xf32>
    %189 = vector.extract_strided_slice %186 {offsets = [0, 0], sizes = [2, 128], strides = [1, 1]} : vector<2x384xf32> to vector<2x128xf32>
    %190 = vector.extract_strided_slice %188 {offsets = [0, 0], sizes = [2, 128], strides = [1, 1]} : vector<2x384xf32> to vector<2x128xf32>
    %191 = arith.addf %189, %190 : vector<2x128xf32>
    %192 = arith.negf %191 : vector<2x128xf32>
    %193 = math.exp %192 : vector<2x128xf32>
    %cst_52 = arith.constant 1.000000e+00 : f32
    %194 = vector.broadcast %cst_52 : f32 to vector<2x128xf32>
    %195 = arith.addf %194, %193 : vector<2x128xf32>
    %196 = arith.divf %194, %195 : vector<2x128xf32>
    %197 = vector.extract_strided_slice %186 {offsets = [0, 128], sizes = [2, 128], strides = [1, 1]} : vector<2x384xf32> to vector<2x128xf32>
    %198 = vector.extract_strided_slice %188 {offsets = [0, 128], sizes = [2, 128], strides = [1, 1]} : vector<2x384xf32> to vector<2x128xf32>
    %199 = arith.addf %197, %198 : vector<2x128xf32>
    %200 = arith.negf %199 : vector<2x128xf32>
    %201 = math.exp %200 : vector<2x128xf32>
    %cst_53 = arith.constant 1.000000e+00 : f32
    %202 = vector.broadcast %cst_53 : f32 to vector<2x128xf32>
    %203 = arith.addf %202, %201 : vector<2x128xf32>
    %204 = arith.divf %202, %203 : vector<2x128xf32>
    %205 = vector.extract_strided_slice %186 {offsets = [0, 256], sizes = [2, 128], strides = [1, 1]} : vector<2x384xf32> to vector<2x128xf32>
    %206 = vector.extract_strided_slice %188 {offsets = [0, 256], sizes = [2, 128], strides = [1, 1]} : vector<2x384xf32> to vector<2x128xf32>
    %207 = vector.broadcast %15 : vector<1x128xf32> to vector<2x128xf32>
    %208 = arith.addf %206, %207 : vector<2x128xf32>
    %209 = arith.mulf %196, %208 : vector<2x128xf32>
    %210 = arith.addf %205, %209 : vector<2x128xf32>
    %211 = math.tanh %210 : vector<2x128xf32>
    %cst_54 = arith.constant 1.000000e+00 : f32
    %212 = vector.broadcast %cst_54 : f32 to vector<2x128xf32>
    %213 = arith.subf %212, %204 : vector<2x128xf32>
    %214 = arith.mulf %213, %211 : vector<2x128xf32>
    %215 = arith.mulf %204, %183 : vector<2x128xf32>
    %216 = arith.addf %214, %215 : vector<2x128xf32>
    %217 = vector.broadcast %c4_i32 : i32 to vector<2x1xi32>
    %218 = arith.cmpi slt, %217, %29 : vector<2x1xi32>
    %219 = vector.shape_cast %218 : vector<2x1xi1> to vector<2x1xi1>
    %220 = vector.broadcast %219 : vector<2x1xi1> to vector<2x128xi1>
    %221 = arith.select %220, %216, %183 : vector<2x128xi1>, vector<2x128xf32>
    %c5_i32 = arith.constant 5 : i32
    %222 = arith.index_cast %c5_i32 : i32 to index
    %c0_55 = arith.constant 0 : index
    %c0_56 = arith.constant 0 : index
    %223 = vector.load %arg9[%222, %c0_55, %c0_56] : memref<8x2x384xf32, #tpu.memory_space<vmem>>, vector<1x2x384xf32>
    %224 = vector.shape_cast %223 : vector<1x2x384xf32> to vector<2x384xf32>
    %225 = arith.truncf %221 : vector<2x128xf32> to vector<2x128xbf16>
    %cst_57 = arith.constant dense<0.000000e+00> : vector<2x384xf32>
    %226 = tpu.matmul %225, %13, %cst_57 {dimension_numbers = #tpu.dot_dimension_numbers<[1], [0], [0], [1], [0, 0, 1, 1], [], []>} : vector<2x128xbf16>, vector<128x384xbf16>, vector<2x384xf32> -> vector<2x384xf32>
    %227 = vector.extract_strided_slice %224 {offsets = [0, 0], sizes = [2, 128], strides = [1, 1]} : vector<2x384xf32> to vector<2x128xf32>
    %228 = vector.extract_strided_slice %226 {offsets = [0, 0], sizes = [2, 128], strides = [1, 1]} : vector<2x384xf32> to vector<2x128xf32>
    %229 = arith.addf %227, %228 : vector<2x128xf32>
    %230 = arith.negf %229 : vector<2x128xf32>
    %231 = math.exp %230 : vector<2x128xf32>
    %cst_58 = arith.constant 1.000000e+00 : f32
    %232 = vector.broadcast %cst_58 : f32 to vector<2x128xf32>
    %233 = arith.addf %232, %231 : vector<2x128xf32>
    %234 = arith.divf %232, %233 : vector<2x128xf32>
    %235 = vector.extract_strided_slice %224 {offsets = [0, 128], sizes = [2, 128], strides = [1, 1]} : vector<2x384xf32> to vector<2x128xf32>
    %236 = vector.extract_strided_slice %226 {offsets = [0, 128], sizes = [2, 128], strides = [1, 1]} : vector<2x384xf32> to vector<2x128xf32>
    %237 = arith.addf %235, %236 : vector<2x128xf32>
    %238 = arith.negf %237 : vector<2x128xf32>
    %239 = math.exp %238 : vector<2x128xf32>
    %cst_59 = arith.constant 1.000000e+00 : f32
    %240 = vector.broadcast %cst_59 : f32 to vector<2x128xf32>
    %241 = arith.addf %240, %239 : vector<2x128xf32>
    %242 = arith.divf %240, %241 : vector<2x128xf32>
    %243 = vector.extract_strided_slice %224 {offsets = [0, 256], sizes = [2, 128], strides = [1, 1]} : vector<2x384xf32> to vector<2x128xf32>
    %244 = vector.extract_strided_slice %226 {offsets = [0, 256], sizes = [2, 128], strides = [1, 1]} : vector<2x384xf32> to vector<2x128xf32>
    %245 = vector.broadcast %15 : vector<1x128xf32> to vector<2x128xf32>
    %246 = arith.addf %244, %245 : vector<2x128xf32>
    %247 = arith.mulf %234, %246 : vector<2x128xf32>
    %248 = arith.addf %243, %247 : vector<2x128xf32>
    %249 = math.tanh %248 : vector<2x128xf32>
    %cst_60 = arith.constant 1.000000e+00 : f32
    %250 = vector.broadcast %cst_60 : f32 to vector<2x128xf32>
    %251 = arith.subf %250, %242 : vector<2x128xf32>
    %252 = arith.mulf %251, %249 : vector<2x128xf32>
    %253 = arith.mulf %242, %221 : vector<2x128xf32>
    %254 = arith.addf %252, %253 : vector<2x128xf32>
    %255 = vector.broadcast %c5_i32 : i32 to vector<2x1xi32>
    %256 = arith.cmpi slt, %255, %29 : vector<2x1xi32>
    %257 = vector.shape_cast %256 : vector<2x1xi1> to vector<2x1xi1>
    %258 = vector.broadcast %257 : vector<2x1xi1> to vector<2x128xi1>
    %259 = arith.select %258, %254, %221 : vector<2x128xi1>, vector<2x128xf32>
    %c6_i32 = arith.constant 6 : i32
    %260 = arith.index_cast %c6_i32 : i32 to index
    %c0_61 = arith.constant 0 : index
    %c0_62 = arith.constant 0 : index
    %261 = vector.load %arg9[%260, %c0_61, %c0_62] : memref<8x2x384xf32, #tpu.memory_space<vmem>>, vector<1x2x384xf32>
    %262 = vector.shape_cast %261 : vector<1x2x384xf32> to vector<2x384xf32>
    %263 = arith.truncf %259 : vector<2x128xf32> to vector<2x128xbf16>
    %cst_63 = arith.constant dense<0.000000e+00> : vector<2x384xf32>
    %264 = tpu.matmul %263, %13, %cst_63 {dimension_numbers = #tpu.dot_dimension_numbers<[1], [0], [0], [1], [0, 0, 1, 1], [], []>} : vector<2x128xbf16>, vector<128x384xbf16>, vector<2x384xf32> -> vector<2x384xf32>
    %265 = vector.extract_strided_slice %262 {offsets = [0, 0], sizes = [2, 128], strides = [1, 1]} : vector<2x384xf32> to vector<2x128xf32>
    %266 = vector.extract_strided_slice %264 {offsets = [0, 0], sizes = [2, 128], strides = [1, 1]} : vector<2x384xf32> to vector<2x128xf32>
    %267 = arith.addf %265, %266 : vector<2x128xf32>
    %268 = arith.negf %267 : vector<2x128xf32>
    %269 = math.exp %268 : vector<2x128xf32>
    %cst_64 = arith.constant 1.000000e+00 : f32
    %270 = vector.broadcast %cst_64 : f32 to vector<2x128xf32>
    %271 = arith.addf %270, %269 : vector<2x128xf32>
    %272 = arith.divf %270, %271 : vector<2x128xf32>
    %273 = vector.extract_strided_slice %262 {offsets = [0, 128], sizes = [2, 128], strides = [1, 1]} : vector<2x384xf32> to vector<2x128xf32>
    %274 = vector.extract_strided_slice %264 {offsets = [0, 128], sizes = [2, 128], strides = [1, 1]} : vector<2x384xf32> to vector<2x128xf32>
    %275 = arith.addf %273, %274 : vector<2x128xf32>
    %276 = arith.negf %275 : vector<2x128xf32>
    %277 = math.exp %276 : vector<2x128xf32>
    %cst_65 = arith.constant 1.000000e+00 : f32
    %278 = vector.broadcast %cst_65 : f32 to vector<2x128xf32>
    %279 = arith.addf %278, %277 : vector<2x128xf32>
    %280 = arith.divf %278, %279 : vector<2x128xf32>
    %281 = vector.extract_strided_slice %262 {offsets = [0, 256], sizes = [2, 128], strides = [1, 1]} : vector<2x384xf32> to vector<2x128xf32>
    %282 = vector.extract_strided_slice %264 {offsets = [0, 256], sizes = [2, 128], strides = [1, 1]} : vector<2x384xf32> to vector<2x128xf32>
    %283 = vector.broadcast %15 : vector<1x128xf32> to vector<2x128xf32>
    %284 = arith.addf %282, %283 : vector<2x128xf32>
    %285 = arith.mulf %272, %284 : vector<2x128xf32>
    %286 = arith.addf %281, %285 : vector<2x128xf32>
    %287 = math.tanh %286 : vector<2x128xf32>
    %cst_66 = arith.constant 1.000000e+00 : f32
    %288 = vector.broadcast %cst_66 : f32 to vector<2x128xf32>
    %289 = arith.subf %288, %280 : vector<2x128xf32>
    %290 = arith.mulf %289, %287 : vector<2x128xf32>
    %291 = arith.mulf %280, %259 : vector<2x128xf32>
    %292 = arith.addf %290, %291 : vector<2x128xf32>
    %293 = vector.broadcast %c6_i32 : i32 to vector<2x1xi32>
    %294 = arith.cmpi slt, %293, %29 : vector<2x1xi32>
    %295 = vector.shape_cast %294 : vector<2x1xi1> to vector<2x1xi1>
    %296 = vector.broadcast %295 : vector<2x1xi1> to vector<2x128xi1>
    %297 = arith.select %296, %292, %259 : vector<2x128xi1>, vector<2x128xf32>
    %c7_i32 = arith.constant 7 : i32
    %298 = arith.index_cast %c7_i32 : i32 to index
    %c0_67 = arith.constant 0 : index
    %c0_68 = arith.constant 0 : index
    %299 = vector.load %arg9[%298, %c0_67, %c0_68] : memref<8x2x384xf32, #tpu.memory_space<vmem>>, vector<1x2x384xf32>
    %300 = vector.shape_cast %299 : vector<1x2x384xf32> to vector<2x384xf32>
    %301 = arith.truncf %297 : vector<2x128xf32> to vector<2x128xbf16>
    %cst_69 = arith.constant dense<0.000000e+00> : vector<2x384xf32>
    %302 = tpu.matmul %301, %13, %cst_69 {dimension_numbers = #tpu.dot_dimension_numbers<[1], [0], [0], [1], [0, 0, 1, 1], [], []>} : vector<2x128xbf16>, vector<128x384xbf16>, vector<2x384xf32> -> vector<2x384xf32>
    %303 = vector.extract_strided_slice %300 {offsets = [0, 0], sizes = [2, 128], strides = [1, 1]} : vector<2x384xf32> to vector<2x128xf32>
    %304 = vector.extract_strided_slice %302 {offsets = [0, 0], sizes = [2, 128], strides = [1, 1]} : vector<2x384xf32> to vector<2x128xf32>
    %305 = arith.addf %303, %304 : vector<2x128xf32>
    %306 = arith.negf %305 : vector<2x128xf32>
    %307 = math.exp %306 : vector<2x128xf32>
    %cst_70 = arith.constant 1.000000e+00 : f32
    %308 = vector.broadcast %cst_70 : f32 to vector<2x128xf32>
    %309 = arith.addf %308, %307 : vector<2x128xf32>
    %310 = arith.divf %308, %309 : vector<2x128xf32>
    %311 = vector.extract_strided_slice %300 {offsets = [0, 128], sizes = [2, 128], strides = [1, 1]} : vector<2x384xf32> to vector<2x128xf32>
    %312 = vector.extract_strided_slice %302 {offsets = [0, 128], sizes = [2, 128], strides = [1, 1]} : vector<2x384xf32> to vector<2x128xf32>
    %313 = arith.addf %311, %312 : vector<2x128xf32>
    %314 = arith.negf %313 : vector<2x128xf32>
    %315 = math.exp %314 : vector<2x128xf32>
    %cst_71 = arith.constant 1.000000e+00 : f32
    %316 = vector.broadcast %cst_71 : f32 to vector<2x128xf32>
    %317 = arith.addf %316, %315 : vector<2x128xf32>
    %318 = arith.divf %316, %317 : vector<2x128xf32>
    %319 = vector.extract_strided_slice %300 {offsets = [0, 256], sizes = [2, 128], strides = [1, 1]} : vector<2x384xf32> to vector<2x128xf32>
    %320 = vector.extract_strided_slice %302 {offsets = [0, 256], sizes = [2, 128], strides = [1, 1]} : vector<2x384xf32> to vector<2x128xf32>
    %321 = vector.broadcast %15 : vector<1x128xf32> to vector<2x128xf32>
    %322 = arith.addf %320, %321 : vector<2x128xf32>
    %323 = arith.mulf %310, %322 : vector<2x128xf32>
    %324 = arith.addf %319, %323 : vector<2x128xf32>
    %325 = math.tanh %324 : vector<2x128xf32>
    %cst_72 = arith.constant 1.000000e+00 : f32
    %326 = vector.broadcast %cst_72 : f32 to vector<2x128xf32>
    %327 = arith.subf %326, %318 : vector<2x128xf32>
    %328 = arith.mulf %327, %325 : vector<2x128xf32>
    %329 = arith.mulf %318, %297 : vector<2x128xf32>
    %330 = arith.addf %328, %329 : vector<2x128xf32>
    %331 = vector.broadcast %c7_i32 : i32 to vector<2x1xi32>
    %332 = arith.cmpi slt, %331, %29 : vector<2x1xi32>
    %333 = vector.shape_cast %332 : vector<2x1xi1> to vector<2x1xi1>
    %334 = vector.broadcast %333 : vector<2x1xi1> to vector<2x128xi1>
    %335 = arith.select %334, %330, %297 : vector<2x128xi1>, vector<2x128xf32>
    %c8_i32 = arith.constant 8 : i32
    %336 = arith.truncf %335 : vector<2x128xf32> to vector<2x128xbf16>
    %c0_73 = arith.constant 0 : index
    %c0_74 = arith.constant 0 : index
    %337 = vector.load %arg8[%c0_73, %c0_74] : memref<2x128xbf16, #tpu.memory_space<vmem>>, vector<2x128xbf16>
    tpu.vector_store %arg8[%c0_73, %c0_74], %336 {strides = array<i32>} : memref<2x128xbf16, #tpu.memory_space<vmem>>, vector<2x128xbf16>,
    return
  }
  func.func @transform_0(%arg0: i32, %arg1: memref<5x2xi32, #tpu.memory_space<smem>>) -> (i32, i32, i32, i32) {
    %c0_i32 = arith.constant 0 : i32
    %c0_i32_0 = arith.constant 0 : i32
    %c0_i32_1 = arith.constant 0 : i32
    %c0_i32_2 = arith.constant 0 : i32
    return %arg0, %c0_i32, %c0_i32_0, %c0_i32_1 : i32, i32, i32, i32
  }
  func.func @transform_1(%arg0: i32, %arg1: memref<5x2xi32, #tpu.memory_space<smem>>) -> (i32, i32, i32) {
    %c0_i32 = arith.constant 0 : i32
    %c0_i32_0 = arith.constant 0 : i32
    %c0_i32_1 = arith.constant 0 : i32
    return %arg0, %c0_i32, %c0_i32_0 : i32, i32, i32
  }
  func.func @transform_2(%arg0: i32, %arg1: memref<5x2xi32, #tpu.memory_space<smem>>) -> (i32, i32, i32) {
    %c0_i32 = arith.constant 0 : i32
    %c0_i32_0 = arith.constant 0 : i32
    %c0_i32_1 = arith.constant 0 : i32
    return %arg0, %c0_i32, %c0_i32_0 : i32, i32, i32
  }
  func.func @transform_3(%arg0: i32, %arg1: memref<5x2xi32, #tpu.memory_space<smem>>) -> (i32, i32, i32) {
    %c0_i32 = arith.constant 0 : i32
    %c0_i32_0 = arith.constant 0 : i32
    %c0_i32_1 = arith.constant 0 : i32
    return %arg0, %c0_i32, %c0_i32_0 : i32, i32, i32
  }
  func.func @transform_4(%arg0: i32, %arg1: memref<5x2xi32, #tpu.memory_space<smem>>) -> (i32, i32, i32) {
    %c0_i32 = arith.constant 0 : i32
    %c0_i32_0 = arith.constant 0 : i32
    %c0_i32_1 = arith.constant 0 : i32
    return %arg0, %c0_i32, %c0_i32_0 : i32, i32, i32
  }
  func.func @transform_5(%arg0: i32, %arg1: memref<5x2xi32, #tpu.memory_space<smem>>) -> (i32, i32, i32) {
    %c0_i32 = arith.constant 0 : i32
    %c0_i32_0 = arith.constant 0 : i32
    %c0_i32_1 = arith.constant 0 : i32
    return %arg0, %c0_i32, %c0_i32_0 : i32, i32, i32
  }
  func.func @transform_6(%arg0: i32, %arg1: memref<5x2xi32, #tpu.memory_space<smem>>) -> (i32, i32) {
    %c0_i32 = arith.constant 0 : i32
    %c0_i32_0 = arith.constant 0 : i32
    return %c0_i32, %arg0 : i32, i32
  }
}

</mosaic_0001>

<llo_original>
// kernel: action_drqa_forward.3
$region0: #{action_drqa_forward.3}
  #allocation0 [shape = 'u32[]', space=smem, size = 0x4, offset = 0x4, fixed_abs, tag = 'smem constant byte address 0x4 - core index']
  #allocation1 [shape = 'u32[144,128]{1,0:T(1,128)}', space=vmem, size = 0x12000, scoped, tag = 'internal scratch']
  %s0 = inlined_call_operand.vmem [shape: bf16[2,640], index: 0, kind: input, shape index: {}]
  %s1 = inlined_call_operand.vmem [shape: bf16[640,256], index: 1, kind: input, shape index: {}]
  %s2 = inlined_call_operand.vmem [shape: f32[1,256], index: 2, kind: input, shape index: {}]
  %s3 = inlined_call_operand.vmem [shape: f32[2,256], index: 3, kind: output, shape index: {}]
  %s4 = sld [smem:[#allocation0]]
  $region22: #{action_drqa_forward.3} parent=0
    _
  %s6 = ssub.s32 1, %s4
  %s7 = scalar_select 0, %s6, %s4
  // Predicated region
  $region2: #{action_drqa_forward.3} parent=0 // pred_check
    _
  $region3: #{action_drqa_forward.3} parent=0 // pred_check_branch
    %9 = sbr.rel (0) target = $region5
  $region4: #{action_drqa_forward.3} parent=0 // pred_region
    _
  $region5: #{action_drqa_forward.3} parent=0 // pred_fallthru
    _
  // Predicated region
  $region6: #{action_drqa_forward.3} parent=0 // pred_check
    _
  $region7: #{action_drqa_forward.3} parent=0 // pred_check_branch
    %11 = sbr.rel (0) target = $region9
  $region8: #{action_drqa_forward.3} parent=0 // pred_region
    _
  $region9: #{action_drqa_forward.3} parent=0 // pred_fallthru
    _
  // Predicated region
  $region10: #{action_drqa_forward.3} parent=0 // pred_check
    _
  $region11: #{action_drqa_forward.3} parent=0 // pred_check_branch
    %13 = sbr.rel (0) target = $region13
  $region12: #{action_drqa_forward.3} parent=0 // pred_region
    _
  $region13: #{action_drqa_forward.3} parent=0 // pred_fallthru
    _
  %v15 = vld [vmem:[%s0] sm:$0x1f]
  %v16 = vld [vmem:[%s1] sm:$0xff]
  %v17 = vld [vmem:[%s1 + $0x8] sm:$0xff]
  %v18 = vld [vmem:[%s1 + $0x10] sm:$0xff]
  %v19 = vld [vmem:[%s1 + $0x18] sm:$0xff]
  %v20 = vld [vmem:[%s1 + $0x20] sm:$0xff]
  %v21 = vld [vmem:[%s1 + $0x28] sm:$0xff]
  %v22 = vld [vmem:[%s1 + $0x30] sm:$0xff]
  %v23 = vld [vmem:[%s1 + $0x38] sm:$0xff]
  %v24 = vld [vmem:[%s1 + $0x40] sm:$0xff]
  %v25 = vld [vmem:[%s1 + $0x48] sm:$0xff]
  %v26 = vld [vmem:[%s1 + $0x50] sm:$0xff]
  %v27 = vld [vmem:[%s1 + $0x58] sm:$0xff]
  %v28 = vld [vmem:[%s1 + $0x60] sm:$0xff]
  %v29 = vld [vmem:[%s1 + $0x68] sm:$0xff]
  %v30 = vld [vmem:[%s1 + $0x70] sm:$0xff]
  %v31 = vld [vmem:[%s1 + $0x78] sm:$0xff]
  %v32 = vld [vmem:[%s1 + $0x80] sm:$0xff]
  %v33 = vld [vmem:[%s1 + $0x88] sm:$0xff]
  %v34 = vld [vmem:[%s1 + $0x90] sm:$0xff]
  %v35 = vld [vmem:[%s1 + $0x98] sm:$0xff]
  %v36 = vld [vmem:[%s1 + $0xa0] sm:$0xff]
  %v37 = vld [vmem:[%s1 + $0xa8] sm:$0xff]
  %v38 = vld [vmem:[%s1 + $0xb0] sm:$0xff]
  %v39 = vld [vmem:[%s1 + $0xb8] sm:$0xff]
  %v40 = vld [vmem:[%s1 + $0xc0] sm:$0xff]
  %v41 = vld [vmem:[%s1 + $0xc8] sm:$0xff]
  %v42 = vld [vmem:[%s1 + $0xd0] sm:$0xff]
  %v43 = vld [vmem:[%s1 + $0xd8] sm:$0xff]
  %v44 = vld [vmem:[%s1 + $0xe0] sm:$0xff]
  %v45 = vld [vmem:[%s1 + $0xe8] sm:$0xff]
  %v46 = vld [vmem:[%s1 + $0xf0] sm:$0xff]
  %v47 = vld [vmem:[%s1 + $0xf8] sm:$0xff]
  %v48 = vld [vmem:[%s1 + $0x100] sm:$0xff]
  %v49 = vld [vmem:[%s1 + $0x108] sm:$0xff]
  %v50 = vld [vmem:[%s1 + $0x110] sm:$0xff]
  %v51 = vld [vmem:[%s1 + $0x118] sm:$0xff]
  %v52 = vld [vmem:[%s1 + $0x120] sm:$0xff]
  %v53 = vld [vmem:[%s1 + $0x128] sm:$0xff]
  %v54 = vld [vmem:[%s1 + $0x130] sm:$0xff]
  %v55 = vld [vmem:[%s1 + $0x138] sm:$0xff]
  %v56 = vld [vmem:[%s1 + $0x140] sm:$0xff]
  %v57 = vld [vmem:[%s1 + $0x148] sm:$0xff]
  %v58 = vld [vmem:[%s1 + $0x150] sm:$0xff]
  %v59 = vld [vmem:[%s1 + $0x158] sm:$0xff]
  %v60 = vld [vmem:[%s1 + $0x160] sm:$0xff]
  %v61 = vld [vmem:[%s1 + $0x168] sm:$0xff]
  %v62 = vld [vmem:[%s1 + $0x170] sm:$0xff]
  %v63 = vld [vmem:[%s1 + $0x178] sm:$0xff]
  %v64 = vld [vmem:[%s1 + $0x180] sm:$0xff]
  %v65 = vld [vmem:[%s1 + $0x188] sm:$0xff]
  %v66 = vld [vmem:[%s1 + $0x190] sm:$0xff]
  %v67 = vld [vmem:[%s1 + $0x198] sm:$0xff]
  %v68 = vld [vmem:[%s1 + $0x1a0] sm:$0xff]
  %v69 = vld [vmem:[%s1 + $0x1a8] sm:$0xff]
  %v70 = vld [vmem:[%s1 + $0x1b0] sm:$0xff]
  %v71 = vld [vmem:[%s1 + $0x1b8] sm:$0xff]
  %v72 = vld [vmem:[%s1 + $0x1c0] sm:$0xff]
  %v73 = vld [vmem:[%s1 + $0x1c8] sm:$0xff]
  %v74 = vld [vmem:[%s1 + $0x1d0] sm:$0xff]
  %v75 = vld [vmem:[%s1 + $0x1d8] sm:$0xff]
  %v76 = vld [vmem:[%s1 + $0x1e0] sm:$0xff]
  %v77 = vld [vmem:[%s1 + $0x1e8] sm:$0xff]
  %v78 = vld [vmem:[%s1 + $0x1f0] sm:$0xff]
  %v79 = vld [vmem:[%s1 + $0x1f8] sm:$0xff]
  %v80 = vld [vmem:[%s1 + $0x200] sm:$0xff]
  %v81 = vld [vmem:[%s1 + $0x208] sm:$0xff]
  %v82 = vld [vmem:[%s1 + $0x210] sm:$0xff]
  %v83 = vld [vmem:[%s1 + $0x218] sm:$0xff]
  %v84 = vld [vmem:[%s1 + $0x220] sm:$0xff]
  %v85 = vld [vmem:[%s1 + $0x228] sm:$0xff]
  %v86 = vld [vmem:[%s1 + $0x230] sm:$0xff]
  %v87 = vld [vmem:[%s1 + $0x238] sm:$0xff]
  %v88 = vld [vmem:[%s1 + $0x240] sm:$0xff]
  %v89 = vld [vmem:[%s1 + $0x248] sm:$0xff]
  %v90 = vld [vmem:[%s1 + $0x250] sm:$0xff]
  %v91 = vld [vmem:[%s1 + $0x258] sm:$0xff]
  %v92 = vld [vmem:[%s1 + $0x260] sm:$0xff]
  %v93 = vld [vmem:[%s1 + $0x268] sm:$0xff]
  %v94 = vld [vmem:[%s1 + $0x270] sm:$0xff]
  %v95 = vld [vmem:[%s1 + $0x278] sm:$0xff]
  %v96 = vld [vmem:[%s2] sm:$0x3]
  %v98 = vlaneseq
  %v99 = vshrl.u32 %v98, 7
  %v100 = vsub.s32 0, %v99
  %v101 = vrot.slane %v96, %v100
  %v102 = vlaneseq
  %v103 = vshrl.u32 %v102, 7
  %v104 = vsub.s32 1, %v103
  %v105 = vrot.slane %v96, %v104
  %v109 = vcombine.high %v15, %v15
  %v111 = vunpack.c.l.s4 1966171168
  %v112 = vunpack.c.0.s8 %v111
  %v113 = vlaneseq
  %v114 = vshrl.u32 %v113, 7
  %v115 = vsub.s32 %v112, %v114
  %v116 = vrot.slane %v15, %v115
  %v118 = vunpack.c.l.s4 1966171168
  %v119 = vunpack.c.0.s8 %v118
  %v120 = vlaneseq
  %v121 = vshrl.u32 %v120, 7
  %v122 = vsub.s32 %v119, %v121
  %v123 = vrot.slane %v109, %v122
  %v124 = vcombine.high %v116, %v116
  %v126 = vunpack.c.l.s4 1966171168
  %v127 = vunpack.c.0.s8 %v126
  %v128 = vlaneseq
  %v129 = vshrl.u32 %v128, 7
  %v130 = vsub.s32 %v127, %v129
  %v131 = vrot.slane %v116, %v130
  %v133 = vunpack.c.l.s4 1966171168
  %v134 = vunpack.c.0.s8 %v133
  %v135 = vlaneseq
  %v136 = vshrl.u32 %v135, 7
  %v137 = vsub.s32 %v134, %v136
  %v138 = vrot.slane %v123, %v137
  %v140 = vunpack.c.l.s4 1966171168
  %v141 = vunpack.c.0.s8 %v140
  %v142 = vlaneseq
  %v143 = vshrl.u32 %v142, 7
  %v144 = vsub.s32 %v141, %v143
  %v145 = vrot.slane %v124, %v144
  %v146 = vcombine.high %v131, %v131
  %v147 = vcombine.high %v145, %v145
  %v233 = vunpack.c.l.b16 %v16
  %v234 = vunpack.c.h.b16 %v16
  %v235 = vunpack.c.l.b16 %v17
  %v236 = vunpack.c.h.b16 %v17
  %v237 = vunpack.c.l.b16 %v18
  %v238 = vunpack.c.h.b16 %v18
  %v239 = vunpack.c.l.b16 %v19
  %v240 = vunpack.c.h.b16 %v19
  %v241 = vunpack.c.l.b16 %v20
  %v242 = vunpack.c.h.b16 %v20
  %v243 = vunpack.c.l.b16 %v21
  %v244 = vunpack.c.h.b16 %v21
  %v245 = vunpack.c.l.b16 %v22
  %v246 = vunpack.c.h.b16 %v22
  %v247 = vunpack.c.l.b16 %v23
  %v248 = vunpack.c.h.b16 %v23
  %v249 = vunpack.c.l.b16 %v24
  %v250 = vunpack.c.h.b16 %v24
  %v251 = vunpack.c.l.b16 %v25
  %v252 = vunpack.c.h.b16 %v25
  %v253 = vunpack.c.l.b16 %v26
  %v254 = vunpack.c.h.b16 %v26
  %v255 = vunpack.c.l.b16 %v27
  %v256 = vunpack.c.h.b16 %v27
  %v257 = vunpack.c.l.b16 %v28
  %v258 = vunpack.c.h.b16 %v28
  %v259 = vunpack.c.l.b16 %v29
  %v260 = vunpack.c.h.b16 %v29
  %v261 = vunpack.c.l.b16 %v30
  %v262 = vunpack.c.h.b16 %v30
  %v263 = vunpack.c.l.b16 %v31
  %v264 = vunpack.c.h.b16 %v31
  %v265 = vunpack.c.l.b16 %v32
  %v266 = vunpack.c.h.b16 %v32
  %v267 = vunpack.c.l.b16 %v33
  %v268 = vunpack.c.h.b16 %v33
  %v269 = vunpack.c.l.b16 %v34
  %v270 = vunpack.c.h.b16 %v34
  %v271 = vunpack.c.l.b16 %v35
  %v272 = vunpack.c.h.b16 %v35
  %v273 = vunpack.c.l.b16 %v36
  %v274 = vunpack.c.h.b16 %v36
  %v275 = vunpack.c.l.b16 %v37
  %v276 = vunpack.c.h.b16 %v37
  %v277 = vunpack.c.l.b16 %v38
  %v278 = vunpack.c.h.b16 %v38
  %v279 = vunpack.c.l.b16 %v39
  %v280 = vunpack.c.h.b16 %v39
  %v281 = vunpack.c.l.b16 %v40
  %v282 = vunpack.c.h.b16 %v40
  %v283 = vunpack.c.l.b16 %v41
  %v284 = vunpack.c.h.b16 %v41
  %v285 = vunpack.c.l.b16 %v42
  %v286 = vunpack.c.h.b16 %v42
  %v287 = vunpack.c.l.b16 %v43
  %v288 = vunpack.c.h.b16 %v43
  %v289 = vunpack.c.l.b16 %v44
  %v290 = vunpack.c.h.b16 %v44
  %v291 = vunpack.c.l.b16 %v45
  %v292 = vunpack.c.h.b16 %v45
  %v293 = vunpack.c.l.b16 %v46
  %v294 = vunpack.c.h.b16 %v46
  %v295 = vunpack.c.l.b16 %v47
  %v296 = vunpack.c.h.b16 %v47
  %v297 = vunpack.c.l.b16 %v48
  %v298 = vunpack.c.h.b16 %v48
  %v299 = vunpack.c.l.b16 %v49
  %v300 = vunpack.c.h.b16 %v49
  %v301 = vunpack.c.l.b16 %v50
  %v302 = vunpack.c.h.b16 %v50
  %v303 = vunpack.c.l.b16 %v51
  %v304 = vunpack.c.h.b16 %v51
  %v305 = vunpack.c.l.b16 %v52
  %v306 = vunpack.c.h.b16 %v52
  %v307 = vunpack.c.l.b16 %v53
  %v308 = vunpack.c.h.b16 %v53
  %v309 = vunpack.c.l.b16 %v54
  %v310 = vunpack.c.h.b16 %v54
  %v311 = vunpack.c.l.b16 %v55
  %v312 = vunpack.c.h.b16 %v55
  %v313 = vunpack.c.l.b16 %v56
  %v314 = vunpack.c.h.b16 %v56
  %v315 = vunpack.c.l.b16 %v57
  %v316 = vunpack.c.h.b16 %v57
  %v317 = vunpack.c.l.b16 %v58
  %v318 = vunpack.c.h.b16 %v58
  %v319 = vunpack.c.l.b16 %v59
  %v320 = vunpack.c.h.b16 %v59
  %v321 = vunpack.c.l.b16 %v60
  %v322 = vunpack.c.h.b16 %v60
  %v323 = vunpack.c.l.b16 %v61
  %v324 = vunpack.c.h.b16 %v61
  %v325 = vunpack.c.l.b16 %v62
  %v326 = vunpack.c.h.b16 %v62
  %v327 = vunpack.c.l.b16 %v63
  %v328 = vunpack.c.h.b16 %v63
  %v329 = vunpack.c.l.b16 %v64
  %v330 = vunpack.c.h.b16 %v64
  %v331 = vunpack.c.l.b16 %v65
  %v332 = vunpack.c.h.b16 %v65
  %v333 = vunpack.c.l.b16 %v66
  %v334 = vunpack.c.h.b16 %v66
  %v335 = vunpack.c.l.b16 %v67
  %v336 = vunpack.c.h.b16 %v67
  %v337 = vunpack.c.l.b16 %v68
  %v338 = vunpack.c.h.b16 %v68
  %v339 = vunpack.c.l.b16 %v69
  %v340 = vunpack.c.h.b16 %v69
  %v341 = vunpack.c.l.b16 %v70
  %v342 = vunpack.c.h.b16 %v70
  %v343 = vunpack.c.l.b16 %v71
  %v344 = vunpack.c.h.b16 %v71
  %v345 = vunpack.c.l.b16 %v72
  %v346 = vunpack.c.h.b16 %v72
  %v347 = vunpack.c.l.b16 %v73
  %v348 = vunpack.c.h.b16 %v73
  %v349 = vunpack.c.l.b16 %v74
  %v350 = vunpack.c.h.b16 %v74
  %v351 = vunpack.c.l.b16 %v75
  %v352 = vunpack.c.h.b16 %v75
  %v353 = vunpack.c.l.b16 %v76
  %v354 = vunpack.c.h.b16 %v76
  %v355 = vunpack.c.l.b16 %v77
  %v356 = vunpack.c.h.b16 %v77
  %v357 = vunpack.c.l.b16 %v78
  %v358 = vunpack.c.h.b16 %v78
  %v359 = vunpack.c.l.b16 %v79
  %v360 = vunpack.c.h.b16 %v79
  %v361 = vunpack.c.l.b16 %v80
  %v362 = vunpack.c.h.b16 %v80
  %v363 = vunpack.c.l.b16 %v81
  %v364 = vunpack.c.h.b16 %v81
  %v365 = vunpack.c.l.b16 %v82
  %v366 = vunpack.c.h.b16 %v82
  %v367 = vunpack.c.l.b16 %v83
  %v368 = vunpack.c.h.b16 %v83
  %v369 = vunpack.c.l.b16 %v84
  %v370 = vunpack.c.h.b16 %v84
  %v371 = vunpack.c.l.b16 %v85
  %v372 = vunpack.c.h.b16 %v85
  %v373 = vunpack.c.l.b16 %v86
  %v374 = vunpack.c.h.b16 %v86
  %v375 = vunpack.c.l.b16 %v87
  %v376 = vunpack.c.h.b16 %v87
  %v377 = vunpack.c.l.b16 %v88
  %v378 = vunpack.c.h.b16 %v88
  %v379 = vunpack.c.l.b16 %v89
  %v380 = vunpack.c.h.b16 %v89
  %v381 = vunpack.c.l.b16 %v90
  %v382 = vunpack.c.h.b16 %v90
  %v383 = vunpack.c.l.b16 %v91
  %v384 = vunpack.c.h.b16 %v91
  %v385 = vunpack.c.l.b16 %v92
  %v386 = vunpack.c.h.b16 %v92
  %v387 = vunpack.c.l.b16 %v93
  %v388 = vunpack.c.h.b16 %v93
  %v389 = vunpack.c.l.b16 %v94
  %v390 = vunpack.c.h.b16 %v94
  %v391 = vunpack.c.l.b16 %v95
  %v392 = vunpack.c.h.b16 %v95
  %v393 = vpack.c.b16 %v235, %v233
  %v394 = vpack.c.b16 %v236, %v234
  %v395 = vpack.c.b16 %v239, %v237
  %v396 = vpack.c.b16 %v240, %v238
  %v397 = vpack.c.b16 %v243, %v241
  %v398 = vpack.c.b16 %v244, %v242
  %v399 = vpack.c.b16 %v247, %v245
  %v400 = vpack.c.b16 %v248, %v246
  %v401 = vpack.c.b16 %v251, %v249
  %v402 = vpack.c.b16 %v252, %v250
  %v403 = vpack.c.b16 %v255, %v253
  %v404 = vpack.c.b16 %v256, %v254
  %v405 = vpack.c.b16 %v259, %v257
  %v406 = vpack.c.b16 %v260, %v258
  %v407 = vpack.c.b16 %v263, %v261
  %v408 = vpack.c.b16 %v264, %v262
  %v409 = vpack.c.b16 %v267, %v265
  %v410 = vpack.c.b16 %v268, %v266
  %v411 = vpack.c.b16 %v271, %v269
  %v412 = vpack.c.b16 %v272, %v270
  %v413 = vpack.c.b16 %v275, %v273
  %v414 = vpack.c.b16 %v276, %v274
  %v415 = vpack.c.b16 %v279, %v277
  %v416 = vpack.c.b16 %v280, %v278
  %v417 = vpack.c.b16 %v283, %v281
  %v418 = vpack.c.b16 %v284, %v282
  %v419 = vpack.c.b16 %v287, %v285
  %v420 = vpack.c.b16 %v288, %v286
  %v421 = vpack.c.b16 %v291, %v289
  %v422 = vpack.c.b16 %v292, %v290
  %v423 = vpack.c.b16 %v295, %v293
  %v424 = vpack.c.b16 %v296, %v294
  %v425 = vpack.c.b16 %v299, %v297
  %v426 = vpack.c.b16 %v300, %v298
  %v427 = vpack.c.b16 %v303, %v301
  %v428 = vpack.c.b16 %v304, %v302
  %v429 = vpack.c.b16 %v307, %v305
  %v430 = vpack.c.b16 %v308, %v306
  %v431 = vpack.c.b16 %v311, %v309
  %v432 = vpack.c.b16 %v312, %v310
  %v433 = vpack.c.b16 %v315, %v313
  %v434 = vpack.c.b16 %v316, %v314
  %v435 = vpack.c.b16 %v319, %v317
  %v436 = vpack.c.b16 %v320, %v318
  %v437 = vpack.c.b16 %v323, %v321
  %v438 = vpack.c.b16 %v324, %v322
  %v439 = vpack.c.b16 %v327, %v325
  %v440 = vpack.c.b16 %v328, %v326
  %v441 = vpack.c.b16 %v331, %v329
  %v442 = vpack.c.b16 %v332, %v330
  %v443 = vpack.c.b16 %v335, %v333
  %v444 = vpack.c.b16 %v336, %v334
  %v445 = vpack.c.b16 %v339, %v337
  %v446 = vpack.c.b16 %v340, %v338
  %v447 = vpack.c.b16 %v343, %v341
  %v448 = vpack.c.b16 %v344, %v342
  %v449 = vpack.c.b16 %v347, %v345
  %v450 = vpack.c.b16 %v348, %v346
  %v451 = vpack.c.b16 %v351, %v349
  %v452 = vpack.c.b16 %v352, %v350
  %v453 = vpack.c.b16 %v355, %v353
  %v454 = vpack.c.b16 %v356, %v354
  %v455 = vpack.c.b16 %v359, %v357
  %v456 = vpack.c.b16 %v360, %v358
  %v457 = vpack.c.b16 %v363, %v361
  %v458 = vpack.c.b16 %v364, %v362
  %v459 = vpack.c.b16 %v367, %v365
  %v460 = vpack.c.b16 %v368, %v366
  %v461 = vpack.c.b16 %v371, %v369
  %v462 = vpack.c.b16 %v372, %v370
  %v463 = vpack.c.b16 %v375, %v373
  %v464 = vpack.c.b16 %v376, %v374
  %v465 = vpack.c.b16 %v379, %v377
  %v466 = vpack.c.b16 %v380, %v378
  %v467 = vpack.c.b16 %v383, %v381
  %v468 = vpack.c.b16 %v384, %v382
  %v469 = vpack.c.b16 %v387, %v385
  %v470 = vpack.c.b16 %v388, %v386
  %v471 = vpack.c.b16 %v391, %v389
  %v472 = vpack.c.b16 %v392, %v390
  %553 = vmatprep.subr.bf16.mxu0 %v408
  %554 = vmatpush1.bf16.msra.mxu0 %v407
  %555 = vmatprep.subr.bf16.mxu0 %v406
  %556 = vmatpush1.bf16.msra.mxu0 %v405
  %557 = vmatprep.subr.bf16.mxu0 %v404
  %558 = vmatpush1.bf16.msra.mxu0 %v403
  %559 = vmatprep.subr.bf16.mxu0 %v402
  %560 = vmatpush1.bf16.msra.mxu0 %v401
  %561 = vmatprep.subr.bf16.mxu0 %v400
  %562 = vmatpush1.bf16.msra.mxu0 %v399
  %563 = vmatprep.subr.bf16.mxu0 %v398
  %564 = vmatpush1.bf16.msra.mxu0 %v397
  %565 = vmatprep.subr.bf16.mxu0 %v396
  %566 = vmatpush1.bf16.msra.mxu0 %v395
  %567 = vmatprep.subr.bf16.mxu0 %v394
  %568 = vmatpush1.bf16.msra.mxu0 %v393
  %569 = vmatprep.subr.bf16.mxu0 %v424
  %570 = vmatpush2.bf16.msra.mxu0 %v423
  %571 = vmatprep.subr.bf16.mxu0 %v422
  %572 = vmatpush2.bf16.msra.mxu0 %v421
  %573 = vmatprep.subr.bf16.mxu0 %v420
  %574 = vmatpush2.bf16.msra.mxu0 %v419
  %575 = vmatprep.subr.bf16.mxu0 %v418
  %576 = vmatpush2.bf16.msra.mxu0 %v417
  %577 = vmatprep.subr.bf16.mxu0 %v416
  %578 = vmatpush2.bf16.msra.mxu0 %v415
  %579 = vmatprep.subr.bf16.mxu0 %v414
  %580 = vmatpush2.bf16.msra.mxu0 %v413
  %581 = vmatprep.subr.bf16.mxu0 %v412
  %582 = vmatpush2.bf16.msra.mxu0 %v411
  %583 = vmatprep.subr.bf16.mxu0 %v410
  %584 = vmatpush2.bf16.msra.mxu0 %v409
  %585 = vmatprep.mubr.bf16.mxu0 %v145
  %586 = vmatmul.mubr.bf16.gmra.mxu0 %v131
  %v587 = vpop.f32.mrf.mxu0
  %v588 = vadd.f32 %v101, %v587
  %v589 = vpop.f32.mrf.mxu0
  %v590 = vadd.f32 %v105, %v589
  %v591 = vpop.f32.mrf.mxu0
  %v592 = vpop.f32.mrf.mxu0
  %593 = vdwg.mxu0
  %594 = vmatprep.subr.bf16.mxu0 %v440
  %595 = vmatpush1.bf16.msra.mxu0 %v439
  %596 = vmatprep.subr.bf16.mxu0 %v438
  %597 = vmatpush1.bf16.msra.mxu0 %v437
  %598 = vmatprep.subr.bf16.mxu0 %v436
  %599 = vmatpush1.bf16.msra.mxu0 %v435
  %600 = vmatprep.subr.bf16.mxu0 %v434
  %601 = vmatpush1.bf16.msra.mxu0 %v433
  %602 = vmatprep.subr.bf16.mxu0 %v432
  %603 = vmatpush1.bf16.msra.mxu0 %v431
  %604 = vmatprep.subr.bf16.mxu0 %v430
  %605 = vmatpush1.bf16.msra.mxu0 %v429
  %606 = vmatprep.subr.bf16.mxu0 %v428
  %607 = vmatpush1.bf16.msra.mxu0 %v427
  %608 = vmatprep.subr.bf16.mxu0 %v426
  %609 = vmatpush1.bf16.msra.mxu0 %v425
  %610 = vmatprep.subr.bf16.mxu0 %v456
  %611 = vmatpush2.bf16.msra.mxu0 %v455
  %612 = vmatprep.subr.bf16.mxu0 %v454
  %613 = vmatpush2.bf16.msra.mxu0 %v453
  %614 = vmatprep.subr.bf16.mxu0 %v452
  %615 = vmatpush2.bf16.msra.mxu0 %v451
  %616 = vmatprep.subr.bf16.mxu0 %v450
  %617 = vmatpush2.bf16.msra.mxu0 %v449
  %618 = vmatprep.subr.bf16.mxu0 %v448
  %619 = vmatpush2.bf16.msra.mxu0 %v447
  %620 = vmatprep.subr.bf16.mxu0 %v446
  %621 = vmatpush2.bf16.msra.mxu0 %v445
  %622 = vmatprep.subr.bf16.mxu0 %v444
  %623 = vmatpush2.bf16.msra.mxu0 %v443
  %624 = vmatprep.subr.bf16.mxu0 %v442
  %625 = vmatpush2.bf16.msra.mxu0 %v441
  %626 = vmatprep.mubr.bf16.mxu0 %v147
  %627 = vmatmul.mubr.bf16.gmra.mxu0 %v146
  %v628 = vpop.f32.mrf.mxu0
  %v629 = vadd.f32 %v588, %v628
  %v630 = vpop.f32.mrf.mxu0
  %v631 = vadd.f32 %v590, %v630
  %v632 = vpop.f32.mrf.mxu0
  %v633 = vpop.f32.mrf.mxu0
  %634 = vdwg.mxu0
  %635 = vmatprep.subr.bf16.mxu0 %v472
  %636 = vmatpush1.bf16.msra.mxu0 %v471
  %637 = vmatprep.subr.bf16.mxu0 %v470
  %638 = vmatpush1.bf16.msra.mxu0 %v469
  %639 = vmatprep.subr.bf16.mxu0 %v468
  %640 = vmatpush1.bf16.msra.mxu0 %v467
  %641 = vmatprep.subr.bf16.mxu0 %v466
  %642 = vmatpush1.bf16.msra.mxu0 %v465
  %643 = vmatprep.subr.bf16.mxu0 %v464
  %644 = vmatpush1.bf16.msra.mxu0 %v463
  %645 = vmatprep.subr.bf16.mxu0 %v462
  %646 = vmatpush1.bf16.msra.mxu0 %v461
  %647 = vmatprep.subr.bf16.mxu0 %v460
  %648 = vmatpush1.bf16.msra.mxu0 %v459
  %649 = vmatprep.subr.bf16.mxu0 %v458
  %650 = vmatpush1.bf16.msra.mxu0 %v457
  %651 = vmatprep.subr.bf16.mxu0 0
  %652 = vmatpush2.bf16.msra.mxu0 0
  %653 = vmatprep.subr.bf16.mxu0 0
  %654 = vmatpush2.bf16.msra.mxu0 0
  %655 = vmatprep.subr.bf16.mxu0 0
  %656 = vmatpush2.bf16.msra.mxu0 0
  %657 = vmatprep.subr.bf16.mxu0 0
  %658 = vmatpush2.bf16.msra.mxu0 0
  %659 = vmatprep.subr.bf16.mxu0 0
  %660 = vmatpush2.bf16.msra.mxu0 0
  %661 = vmatprep.subr.bf16.mxu0 0
  %662 = vmatpush2.bf16.msra.mxu0 0
  %663 = vmatprep.subr.bf16.mxu0 0
  %664 = vmatpush2.bf16.msra.mxu0 0
  %665 = vmatprep.subr.bf16.mxu0 0
  %666 = vmatpush2.bf16.msra.mxu0 0
  %667 = vmatprep.mubr.bf16.mxu0 0
  %668 = vmatmul.mubr.bf16.gmra.mxu0 %v138
  %v669 = vpop.f32.mrf.mxu0
  %v670 = vadd.f32 %v629, %v669
  %v671 = vpop.f32.mrf.mxu0
  %v672 = vadd.f32 %v631, %v671
  %v673 = vpop.f32.mrf.mxu0
  %v674 = vpop.f32.mrf.mxu0
  %675 = vdwg.mxu0
  %v676 = vmax.f32 %v670, 0.0
  %v677 = vmax.f32 %v672, 0.0
  %v680 = vcombine.low %v676, %v677
  %v682 = vunpack.c.l.s4 1983009808
  %v683 = vunpack.c.0.s8 %v682
  %v684 = vlaneseq
  %v685 = vshrl.u32 %v684, 7
  %v686 = vsub.s32 %v683, %v685
  %v687 = vrot.slane %v680, %v686
  %689 = vst [vmem:[%s3] sm:$0xf] %v687
  // Predicated region
  $region14: #{action_drqa_forward.3} parent=0 // pred_check
    _
  $region15: #{action_drqa_forward.3} parent=0 // pred_check_branch
    %691 = sbr.rel (0) target = $region17
  $region16: #{action_drqa_forward.3} parent=0 // pred_region
    _
  $region17: #{action_drqa_forward.3} parent=0 // pred_fallthru
    _
  // Predicated region
  $region18: #{action_drqa_forward.3} parent=0 // pred_check
    _
  $region19: #{action_drqa_forward.3} parent=0 // pred_check_branch
    %693 = sbr.rel (0) target = $region21
  $region20: #{action_drqa_forward.3} parent=0 // pred_region
    _
  $region21: #{action_drqa_forward.3} parent=0 // pred_fallthru
    _

// kernel: action_drqa_forward.2
$region0: #{action_drqa_forward.2}
  #allocation0 [shape = 'u32[]', space=smem, size = 0x4, offset = 0x4, fixed_abs, tag = 'smem constant byte address 0x4 - core index']
  #allocation1 [shape = 'u32[144,128]{1,0:T(1,128)}', space=vmem, size = 0x12000, scoped, tag = 'internal scratch']
  #allocation2 [shape = 'f32[8,2,384]{2,1,0:T(2,128)}', space=vmem, size = 0x6000, scoped, tag = 'scratch operand']
  #allocation3 [shape = 's32[1]{0}', space=sflag, size = 0x4, scoped, tag = 'scoped memory for action_drqa_forward.2']
  #allocation4 [shape = 'u8[4096]{0}', space=smem, size = 0x1000, scoped, tag = 'prefetched SMEM operand 0']
  %s0 = inlined_call_operand.vmem [shape: s32[5,2], index: 0, kind: input, shape index: {}]
  %s1 = inlined_call_operand.vmem [shape: bf16[5,8,2,128], index: 1, kind: input, shape index: {}]
  %s2 = inlined_call_operand.vmem [shape: f32[5,2,128], index: 2, kind: input, shape index: {}]
  %s3 = inlined_call_operand.hbm [shape: bf16[5,128,384], index: 3, kind: input, shape index: {}]
  %s4 = inlined_call_operand.hbm [shape: bf16[5,128,384], index: 4, kind: input, shape index: {}]
  %s5 = inlined_call_operand.vmem [shape: f32[5,1,384], index: 5, kind: input, shape index: {}]
  %s6 = inlined_call_operand.vmem [shape: f32[5,1,128], index: 6, kind: input, shape index: {}]
  %s7 = inlined_call_operand.vmem [shape: bf16[2,640], index: 7, kind: output, shape index: {}]
  %s8 = sld [smem:[#allocation0]]
  $region65: #{action_drqa_forward.2} parent=0
    _
  %s10 = ssub.s32 1, %s8
  %s11 = scalar_select 0, %s10, %s8
  %s12 = sshll.u32 %s0, 4
  %s13 = int_to_ptr.vmem [resolvable:$true] %s12
  %15 = dma.vmem_to_smem %s13, 128, [#allocation4], [#allocation3]
  %16 = dma.done [#allocation3], 128
  %17 = sfence
  $region1: #{action_drqa_forward.2} parent=0
    #allocation5 [shape = 'u8[196608]{0}', space=vmem, size = 0x30000, scoped, tag = 'input window, operand 3']
    #allocation6 [shape = 's32[2]{0}', space=sflag, size = 0x8, scoped, tag = 'scoped memory for action_drqa_forward.2']
    #allocation7 [shape = 'u8[196608]{0}', space=vmem, size = 0x30000, scoped, tag = 'input window, operand 4']
    #allocation8 [shape = 's32[2]{0}', space=sflag, size = 0x8, scoped, tag = 'scoped memory for action_drqa_forward.2']
    %18 = vsyncpa [#allocation6], 0
    %s19 = scalar_lea.sflag [#allocation6], 1
    %20 = vsyncpa %s19, 0
    %21 = vsyncpa [#allocation8], 0
    %s22 = scalar_lea.sflag [#allocation8], 1
    %23 = vsyncpa %s22, 0
    loop: start=0, step=1, limit=7
    $region2: #{action_drqa_forward.2} parent=1 // loop_pre_header
      _
    $region3: #{action_drqa_forward.2} parent=1 // loop_header
      %s25 = sphi 0, %s29
      %p26 = scmp.ge.s32.totalorder %s25, 7
      %s35 = sphi 0, %s37
      %s38 = sphi 0, %s35
      %s39 = sphi 0, %s38
      %s55 = sphi 0, %s39
      %s61 = sphi 0, %s63
      %s64 = sphi 0, %s61
      %s65 = sphi 0, %s64
      %s81 = sphi 0, %s65
      %s87 = sphi 0, %s89
      %s90 = sphi 0, %s87
      %s91 = sphi 0, %s90
      %s107 = sphi 0, %s91
      %s113 = sphi 0, %s115
      %s116 = sphi 0, %s113
      %s117 = sphi 0, %s116
      %s133 = sphi 0, %s117
      %s139 = sphi 0, %s141
      %s142 = sphi 0, %s139
      %s143 = sphi 0, %s142
      %s159 = sphi 0, %s143
      %s165 = sphi 0, %s167
      %s168 = sphi 0, %s165
      %s169 = sphi 0, %s168
      %s185 = sphi 0, %s169
      %s191 = sphi 0, %s193
      %s194 = sphi 0, %s191
      %s195 = sphi 0, %s194
      %s211 = sphi 0, %s195
    $region4: #{action_drqa_forward.2} parent=1 // loop_header_branch
      %28 = sbr.rel (%p26) target = $region8
    $region5: #{action_drqa_forward.2} parent=1 // loop_body
      %s30 = ssub.s32 %s25, 1
      %s31 = ssub.s32 %s25, 2
      %s32 = sadd.s32 %s25, 1
      %s33 = ssub.s32 %s25, %s32
      %p34 = scmp.eq.s32.totalorder %s33, 0
      %s36 = sadd.s32 %s35, 1
      %s37 = scalar_select %p34, %s35, %s36
      %p40 = pneg %p34
      %p41 = scmp.eq.s32.totalorder %s25, 4
      %p42 = por %p40, %p41
      %p43 = scmp.ne.s32.totalorder %s35, %s38
      %p44 = scmp.eq.s32.totalorder %s25, 0
      %p45 = por %p43, %p44
      %p46 = scmp.ne.s32.totalorder %s35, %s38
      %p47 = scmp.eq.s32.totalorder %s30, 4
      %p48 = por %p46, %p47
      %p49 = scmp.ne.s32.totalorder %s38, %s39
      %p50 = scmp.eq.s32.totalorder %s30, 0
      %p51 = por %p49, %p50
      %p52 = scmp.ne.s32.totalorder %s38, %s39
      %p53 = scmp.eq.s32.totalorder %s31, 4
      %p54 = por %p52, %p53
      %p56 = scmp.ne.s32.totalorder %s39, %s55
      %p57 = scmp.eq.s32.totalorder %s31, 0
      %p58 = por %p56, %p57
      %s59 = ssub.s32 %s25, %s32
      %p60 = scmp.eq.s32.totalorder %s59, 0
      %s62 = sadd.s32 %s61, 1
      %s63 = scalar_select %p60, %s61, %s62
      %p66 = pneg %p60
      %p67 = scmp.eq.s32.totalorder %s25, 4
      %p68 = por %p66, %p67
      %p69 = scmp.ne.s32.totalorder %s61, %s64
      %p70 = scmp.eq.s32.totalorder %s25, 0
      %p71 = por %p69, %p70
      %p72 = scmp.ne.s32.totalorder %s61, %s64
      %p73 = scmp.eq.s32.totalorder %s30, 4
      %p74 = por %p72, %p73
      %p75 = scmp.ne.s32.totalorder %s64, %s65
      %p76 = scmp.eq.s32.totalorder %s30, 0
      %p77 = por %p75, %p76
      %p78 = scmp.ne.s32.totalorder %s64, %s65
      %p79 = scmp.eq.s32.totalorder %s31, 4
      %p80 = por %p78, %p79
      %p82 = scmp.ne.s32.totalorder %s65, %s81
      %p83 = scmp.eq.s32.totalorder %s31, 0
      %p84 = por %p82, %p83
      %s85 = ssub.s32 %s25, %s32
      %p86 = scmp.eq.s32.totalorder %s85, 0
      %s88 = sadd.s32 %s87, 1
      %s89 = scalar_select %p86, %s87, %s88
      %p92 = pneg %p86
      %p93 = scmp.eq.s32.totalorder %s25, 4
      %p94 = por %p92, %p93
      %p95 = scmp.ne.s32.totalorder %s87, %s90
      %p96 = scmp.eq.s32.totalorder %s25, 0
      %p97 = por %p95, %p96
      %p98 = scmp.ne.s32.totalorder %s87, %s90
      %p99 = scmp.eq.s32.totalorder %s30, 4
      %p100 = por %p98, %p99
      %p101 = scmp.ne.s32.totalorder %s90, %s91
      %p102 = scmp.eq.s32.totalorder %s30, 0
      %p103 = por %p101, %p102
      %p104 = scmp.ne.s32.totalorder %s90, %s91
      %p105 = scmp.eq.s32.totalorder %s31, 4
      %p106 = por %p104, %p105
      %p108 = scmp.ne.s32.totalorder %s91, %s107
      %p109 = scmp.eq.s32.totalorder %s31, 0
      %p110 = por %p108, %p109
      %s111 = ssub.s32 %s25, %s32
      %p112 = scmp.eq.s32.totalorder %s111, 0
      %s114 = sadd.s32 %s113, 1
      %s115 = scalar_select %p112, %s113, %s114
      %p118 = pneg %p112
      %p119 = scmp.eq.s32.totalorder %s25, 4
      %p120 = por %p118, %p119
      %p121 = scmp.ne.s32.totalorder %s113, %s116
      %p122 = scmp.eq.s32.totalorder %s25, 0
      %p123 = por %p121, %p122
      %p124 = scmp.ne.s32.totalorder %s113, %s116
      %p125 = scmp.eq.s32.totalorder %s30, 4
      %p126 = por %p124, %p125
      %p127 = scmp.ne.s32.totalorder %s116, %s117
      %p128 = scmp.eq.s32.totalorder %s30, 0
      %p129 = por %p127, %p128
      %p130 = scmp.ne.s32.totalorder %s116, %s117
      %p131 = scmp.eq.s32.totalorder %s31, 4
      %p132 = por %p130, %p131
      %p134 = scmp.ne.s32.totalorder %s117, %s133
      %p135 = scmp.eq.s32.totalorder %s31, 0
      %p136 = por %p134, %p135
      %s137 = ssub.s32 %s25, %s32
      %p138 = scmp.eq.s32.totalorder %s137, 0
      %s140 = sadd.s32 %s139, 1
      %s141 = scalar_select %p138, %s139, %s140
      %p144 = pneg %p138
      %p145 = scmp.eq.s32.totalorder %s25, 4
      %p146 = por %p144, %p145
      %p147 = scmp.ne.s32.totalorder %s139, %s142
      %p148 = scmp.eq.s32.totalorder %s25, 0
      %p149 = por %p147, %p148
      %p150 = scmp.ne.s32.totalorder %s139, %s142
      %p151 = scmp.eq.s32.totalorder %s30, 4
      %p152 = por %p150, %p151
      %p153 = scmp.ne.s32.totalorder %s142, %s143
      %p154 = scmp.eq.s32.totalorder %s30, 0
      %p155 = por %p153, %p154
      %p156 = scmp.ne.s32.totalorder %s142, %s143
      %p157 = scmp.eq.s32.totalorder %s31, 4
      %p158 = por %p156, %p157
      %p160 = scmp.ne.s32.totalorder %s143, %s159
      %p161 = scmp.eq.s32.totalorder %s31, 0
      %p162 = por %p160, %p161
      %s163 = ssub.s32 %s25, %s32
      %p164 = scmp.eq.s32.totalorder %s163, 0
      %s166 = sadd.s32 %s165, 1
      %s167 = scalar_select %p164, %s165, %s166
      %p170 = pneg %p164
      %p171 = scmp.eq.s32.totalorder %s25, 4
      %p172 = por %p170, %p171
      %p173 = scmp.ne.s32.totalorder %s165, %s168
      %p174 = scmp.eq.s32.totalorder %s25, 0
      %p175 = por %p173, %p174
      %p176 = scmp.ne.s32.totalorder %s165, %s168
      %p177 = scmp.eq.s32.totalorder %s30, 4
      %p178 = por %p176, %p177
      %p179 = scmp.ne.s32.totalorder %s168, %s169
      %p180 = scmp.eq.s32.totalorder %s30, 0
      %p181 = por %p179, %p180
      %p182 = scmp.ne.s32.totalorder %s168, %s169
      %p183 = scmp.eq.s32.totalorder %s31, 4
      %p184 = por %p182, %p183
      %p186 = scmp.ne.s32.totalorder %s169, %s185
      %p187 = scmp.eq.s32.totalorder %s31, 0
      %p188 = por %p186, %p187
      %s189 = ssub.s32 %s25, %s32
      %p190 = scmp.eq.s32.totalorder %s189, 0
      %s192 = sadd.s32 %s191, 1
      %s193 = scalar_select %p190, %s191, %s192
      %p196 = pneg %p190
      %p197 = scmp.eq.s32.totalorder %s25, 4
      %p198 = por %p196, %p197
      %p199 = scmp.ne.s32.totalorder %s191, %s194
      %p200 = scmp.eq.s32.totalorder %s25, 0
      %p201 = por %p199, %p200
      %p202 = scmp.ne.s32.totalorder %s191, %s194
      %p203 = scmp.eq.s32.totalorder %s30, 4
      %p204 = por %p202, %p203
      %p205 = scmp.ne.s32.totalorder %s194, %s195
      %p206 = scmp.eq.s32.totalorder %s30, 0
      %p207 = por %p205, %p206
      %p208 = scmp.ne.s32.totalorder %s194, %s195
      %p209 = scmp.eq.s32.totalorder %s31, 4
      %p210 = por %p208, %p209
      %p212 = scmp.ne.s32.totalorder %s195, %s211
      %p213 = scmp.eq.s32.totalorder %s31, 0
      %p214 = por %p212, %p213
      %p215 = scmp.le.s32.totalorder 1, %s25
      %p216 = scmp.lt.s32.totalorder %s25, 6
      %p217 = pnand %p215, %p216
      %p218 = pneg %p217
      // Predicated region
      $region9: #{action_drqa_forward.2} parent=5 // pred_check
        _
      $region10: #{action_drqa_forward.2} parent=5 // pred_check_branch
        %220 = sbr.rel (%p217) target = $region12
      $region11: #{action_drqa_forward.2} parent=5 // pred_region
        %s221 = ssub.s32 %s25, 1
      $region12: #{action_drqa_forward.2} parent=5 // pred_fallthru
        _
      %p222 = scmp.lt.s32.totalorder %s25, 5
      // Predicated region
      $region13: #{action_drqa_forward.2} parent=5 // pred_check
        %p223 = pneg %p222
      $region14: #{action_drqa_forward.2} parent=5 // pred_check_branch
        %225 = sbr.rel (%p223) target = $region16
      $region15: #{action_drqa_forward.2} parent=5 // pred_region
        // Predicated region
        $region17: #{action_drqa_forward.2} parent=15 // pred_check
          %p226 = pneg %p45
        $region18: #{action_drqa_forward.2} parent=15 // pred_check_branch
          %228 = sbr.rel (%p226) target = $region20
        $region19: #{action_drqa_forward.2} parent=15 // pred_region
          %p229 = scmp.lt.s32.totalorder %s25, 4
          %s230 = scalar_select %p229, %s25, 4
          %s231 = smul.addr %s230, 8
          %s232 = scalar_lea.vmem %s1, %s231
        $region20: #{action_drqa_forward.2} parent=15 // pred_fallthru
          _
        // Predicated region
        $region21: #{action_drqa_forward.2} parent=15 // pred_check
          %p233 = pneg %p71
        $region22: #{action_drqa_forward.2} parent=15 // pred_check_branch
          %235 = sbr.rel (%p233) target = $region24
        $region23: #{action_drqa_forward.2} parent=15 // pred_region
          %p236 = scmp.lt.s32.totalorder %s25, 4
          %s237 = scalar_select %p236, %s25, 4
          %s238 = smul.addr %s237, 2
          %s239 = scalar_lea.vmem %s2, %s238
        $region24: #{action_drqa_forward.2} parent=15 // pred_fallthru
          _
        // Predicated region
        $region25: #{action_drqa_forward.2} parent=15 // pred_check
          %p240 = pneg %p97
        $region26: #{action_drqa_forward.2} parent=15 // pred_check_branch
          %242 = sbr.rel (%p240) target = $region28
        $region27: #{action_drqa_forward.2} parent=15 // pred_region
          %s243 = sand.u32 %s87, 1
          %s244 = scalar_lea.sflag [#allocation6], %s243
          %s245 = sand.u32 %s87, 1
          %s246 = smul.addr %s245, 192
          %s247 = scalar_lea.vmem [#allocation5], %s246
          %s249 = ssub.s32 3072, 3072
          %250 = vsyncadd %s244, %s249
          %s251 = smul.addr %s25, 48
          %s252 = smul.addr %s251, 64
          %s253 = scalar_lea.hbm %s3, %s252
          %s254 = sshll.u32 %s247, 4
          %s255 = int_to_ptr.vmem [resolvable:$true] %s254
          %260 = dma.hbm_to_vmem [thread:$0]  %s253, 3072, %s255, %s244, 192, 192, 12
        $region28: #{action_drqa_forward.2} parent=15 // pred_fallthru
          _
        // Predicated region
        $region29: #{action_drqa_forward.2} parent=15 // pred_check
          %p261 = pneg %p123
        $region30: #{action_drqa_forward.2} parent=15 // pred_check_branch
          %263 = sbr.rel (%p261) target = $region32
        $region31: #{action_drqa_forward.2} parent=15 // pred_region
          %s264 = sand.u32 %s113, 1
          %s265 = scalar_lea.sflag [#allocation8], %s264
          %s266 = sand.u32 %s113, 1
          %s267 = smul.addr %s266, 192
          %s268 = scalar_lea.vmem [#allocation7], %s267
          %s270 = ssub.s32 3072, 3072
          %271 = vsyncadd %s265, %s270
          %s272 = smul.addr %s25, 48
          %s273 = smul.addr %s272, 64
          %s274 = scalar_lea.hbm %s4, %s273
          %s275 = sshll.u32 %s268, 4
          %s276 = int_to_ptr.vmem [resolvable:$true] %s275
          %281 = dma.hbm_to_vmem [thread:$0]  %s274, 3072, %s276, %s265, 192, 192, 12
        $region32: #{action_drqa_forward.2} parent=15 // pred_fallthru
          _
        // Predicated region
        $region33: #{action_drqa_forward.2} parent=15 // pred_check
          %p282 = pneg %p149
        $region34: #{action_drqa_forward.2} parent=15 // pred_check_branch
          %284 = sbr.rel (%p282) target = $region36
        $region35: #{action_drqa_forward.2} parent=15 // pred_region
          %p285 = scmp.lt.s32.totalorder %s25, 4
          %s286 = scalar_select %p285, %s25, 4
          %s287 = smul.addr %s286, 3
          %s288 = scalar_lea.vmem %s5, %s287
        $region36: #{action_drqa_forward.2} parent=15 // pred_fallthru
          _
        // Predicated region
        $region37: #{action_drqa_forward.2} parent=15 // pred_check
          %p289 = pneg %p175
        $region38: #{action_drqa_forward.2} parent=15 // pred_check_branch
          %291 = sbr.rel (%p289) target = $region40
        $region39: #{action_drqa_forward.2} parent=15 // pred_region
          %p292 = scmp.lt.s32.totalorder %s25, 4
          %s293 = scalar_select %p292, %s25, 4
          %s294 = scalar_lea.vmem %s6, %s293
        $region40: #{action_drqa_forward.2} parent=15 // pred_fallthru
          _
      $region16: #{action_drqa_forward.2} parent=5 // pred_fallthru
        _
      %p295 = scmp.le.s32.totalorder 1, %s25
      %p296 = scmp.lt.s32.totalorder %s25, 6
      %p297 = pnand %p295, %p296
      %p298 = pneg %p297
      // Predicated region
      $region41: #{action_drqa_forward.2} parent=5 // pred_check
        _
      $region42: #{action_drqa_forward.2} parent=5 // pred_check_branch
        %300 = sbr.rel (%p297) target = $region44
      $region43: #{action_drqa_forward.2} parent=5 // pred_region
        %s301 = ssub.s32 %s25, 1
        %s302 = sand.u32 %s90, 1
        %s303 = scalar_lea.sflag [#allocation6], %s302
        %s304 = sand.u32 %s90, 1
        %s305 = smul.addr %s304, 192
        %s306 = scalar_lea.vmem [#allocation5], %s305
        // Predicated region
        $region45: #{action_drqa_forward.2} parent=43 // pred_check
          %p307 = pneg %p103
        $region46: #{action_drqa_forward.2} parent=43 // pred_check_branch
          %309 = sbr.rel (%p307) target = $region48
        $region47: #{action_drqa_forward.2} parent=43 // pred_region
          %310 = dma.done %s303, 3072
        $region48: #{action_drqa_forward.2} parent=43 // pred_fallthru
          _
        %s311 = sand.u32 %s116, 1
        %s312 = scalar_lea.sflag [#allocation8], %s311
        %s313 = sand.u32 %s116, 1
        %s314 = smul.addr %s313, 192
        %s315 = scalar_lea.vmem [#allocation7], %s314
        // Predicated region
        $region49: #{action_drqa_forward.2} parent=43 // pred_check
          %p316 = pneg %p129
        $region50: #{action_drqa_forward.2} parent=43 // pred_check_branch
          %318 = sbr.rel (%p316) target = $region52
        $region51: #{action_drqa_forward.2} parent=43 // pred_region
          %319 = dma.done %s312, 3072
        $region52: #{action_drqa_forward.2} parent=43 // pred_fallthru
          _
        %p320 = scmp.lt.s32.totalorder %s30, 4
        %s321 = scalar_select %p320, %s30, 4
        %s322 = smul.addr %s321, 8
        %s323 = scalar_lea.vmem %s1, %s322
        %p324 = pneg %p51
        %p325 = pneg %p48
        %p326 = scmp.lt.s32.totalorder %s30, 4
        %s327 = scalar_select %p326, %s30, 4
        %s328 = smul.addr %s327, 2
        %s329 = scalar_lea.vmem %s2, %s328
        %p330 = pneg %p77
        %p331 = pneg %p74
        %s332 = sand.u32 %s90, 1
        %s333 = scalar_lea.sflag [#allocation6], %s332
        %s334 = sand.u32 %s90, 1
        %s335 = smul.addr %s334, 192
        %s336 = scalar_lea.vmem [#allocation5], %s335
        %p337 = pneg %p103
        %p338 = pneg %p100
        %s339 = sand.u32 %s116, 1
        %s340 = scalar_lea.sflag [#allocation8], %s339
        %s341 = sand.u32 %s116, 1
        %s342 = smul.addr %s341, 192
        %s343 = scalar_lea.vmem [#allocation7], %s342
        %p344 = pneg %p129
        %p345 = pneg %p126
        %p346 = scmp.lt.s32.totalorder %s30, 4
        %s347 = scalar_select %p346, %s30, 4
        %s348 = smul.addr %s347, 3
        %s349 = scalar_lea.vmem %s5, %s348
        %p350 = pneg %p155
        %p351 = pneg %p152
        %p352 = scmp.lt.s32.totalorder %s30, 4
        %s353 = scalar_select %p352, %s30, 4
        %s354 = scalar_lea.vmem %s6, %s353
        %p355 = pneg %p181
        %p356 = pneg %p178
        %p357 = pneg %p207
        %p358 = pneg %p204
        %p359 = scmp.lt.s32.totalorder %s30, 4
        %s360 = scalar_select %p359, %s30, 4
        %s361 = scalar_lea.vmem %s7, %s360
        %p362 = scmp.lt.s32.totalorder %s30, 4
        %s363 = scalar_select %p362, %s30, 4
        %s364 = smul.addr %s363, 8
        %s365 = scalar_lea.vmem %s1, %s364
        %p366 = scmp.lt.s32.totalorder %s30, 4
        %s367 = scalar_select %p366, %s30, 4
        %s368 = smul.addr %s367, 2
        %s369 = scalar_lea.vmem %s2, %s368
        %p370 = scmp.lt.s32.totalorder %s30, 4
        %s371 = scalar_select %p370, %s30, 4
        %s372 = smul.addr %s371, 3
        %s373 = scalar_lea.vmem %s5, %s372
        %p374 = scmp.lt.s32.totalorder %s30, 4
        %s375 = scalar_select %p374, %s30, 4
        %s376 = scalar_lea.vmem %s6, %s375
        %p377 = scmp.lt.s32.totalorder %s30, 4
        %s378 = scalar_select %p377, %s30, 4
        %s379 = scalar_lea.vmem %s7, %s378
        %v381 = vld [vmem:[%s365] sm:$0x1]
        %v382 = vld [vmem:[%s365 + $0x1] sm:$0x1]
        %v383 = vld [vmem:[%s365 + $0x2] sm:$0x1]
        %v384 = vld [vmem:[%s365 + $0x3] sm:$0x1]
        %v385 = vld [vmem:[%s365 + $0x4] sm:$0x1]
        %v386 = vld [vmem:[%s365 + $0x5] sm:$0x1]
        %v387 = vld [vmem:[%s365 + $0x6] sm:$0x1]
        %v388 = vld [vmem:[%s365 + $0x7] sm:$0x1]
        %v389 = vld [vmem:[%s306] sm:$0xff]
        %v390 = vld [vmem:[%s306 + $0x8] sm:$0xf]
        %v391 = vld [vmem:[%s306 + $0xc] sm:$0xff]
        %v392 = vld [vmem:[%s306 + $0x14] sm:$0xf]
        %v393 = vld [vmem:[%s306 + $0x18] sm:$0xff]
        %v394 = vld [vmem:[%s306 + $0x20] sm:$0xf]
        %v395 = vld [vmem:[%s306 + $0x24] sm:$0xff]
        %v396 = vld [vmem:[%s306 + $0x2c] sm:$0xf]
        %v397 = vld [vmem:[%s306 + $0x30] sm:$0xff]
        %v398 = vld [vmem:[%s306 + $0x38] sm:$0xf]
        %v399 = vld [vmem:[%s306 + $0x3c] sm:$0xff]
        %v400 = vld [vmem:[%s306 + $0x44] sm:$0xf]
        %v401 = vld [vmem:[%s306 + $0x48] sm:$0xff]
        %v402 = vld [vmem:[%s306 + $0x50] sm:$0xf]
        %v403 = vld [vmem:[%s306 + $0x54] sm:$0xff]
        %v404 = vld [vmem:[%s306 + $0x5c] sm:$0xf]
        %v405 = vld [vmem:[%s306 + $0x60] sm:$0xff]
        %v406 = vld [vmem:[%s306 + $0x68] sm:$0xf]
        %v407 = vld [vmem:[%s306 + $0x6c] sm:$0xff]
        %v408 = vld [vmem:[%s306 + $0x74] sm:$0xf]
        %v409 = vld [vmem:[%s306 + $0x78] sm:$0xff]
        %v410 = vld [vmem:[%s306 + $0x80] sm:$0xf]
        %v411 = vld [vmem:[%s306 + $0x84] sm:$0xff]
        %v412 = vld [vmem:[%s306 + $0x8c] sm:$0xf]
        %v413 = vld [vmem:[%s306 + $0x90] sm:$0xff]
        %v414 = vld [vmem:[%s306 + $0x98] sm:$0xf]
        %v415 = vld [vmem:[%s306 + $0x9c] sm:$0xff]
        %v416 = vld [vmem:[%s306 + $0xa4] sm:$0xf]
        %v417 = vld [vmem:[%s306 + $0xa8] sm:$0xff]
        %v418 = vld [vmem:[%s306 + $0xb0] sm:$0xf]
        %v419 = vld [vmem:[%s306 + $0xb4] sm:$0xff]
        %v420 = vld [vmem:[%s306 + $0xbc] sm:$0xf]
        %v421 = vld [vmem:[%s373] sm:$0x7]
        %v423 = vlaneseq
        %v424 = vshrl.u32 %v423, 7
        %v425 = vsub.s32 0, %v424
        %v426 = vrot.slane %v421, %v425
        %v427 = vlaneseq
        %v428 = vshrl.u32 %v427, 7
        %v429 = vsub.s32 1, %v428
        %v430 = vrot.slane %v421, %v429
        %v431 = vlaneseq
        %v432 = vshrl.u32 %v431, 7
        %v433 = vsub.s32 2, %v432
        %v434 = vrot.slane %v421, %v433
        %v446 = vcombine.low %v381, %v382
        %v447 = vcombine.low %v383, %v384
        %v448 = vcombine.low %v385, %v386
        %v449 = vcombine.low %v387, %v388
        %v451 = vunpack.c.l.s4 1966171168
        %v452 = vunpack.c.0.s8 %v451
        %v453 = vlaneseq
        %v454 = vshrl.u32 %v453, 7
        %v455 = vsub.s32 %v452, %v454
        %v456 = vrot.slane %v446, %v455
        %v458 = vunpack.c.l.s4 1966171168
        %v459 = vunpack.c.0.s8 %v458
        %v460 = vlaneseq
        %v461 = vshrl.u32 %v460, 7
        %v462 = vsub.s32 %v459, %v461
        %v463 = vrot.slane %v447, %v462
        %v465 = vunpack.c.l.s4 1966171168
        %v466 = vunpack.c.0.s8 %v465
        %v467 = vlaneseq
        %v468 = vshrl.u32 %v467, 7
        %v469 = vsub.s32 %v466, %v468
        %v470 = vrot.slane %v448, %v469
        %v472 = vunpack.c.l.s4 1966171168
        %v473 = vunpack.c.0.s8 %v472
        %v474 = vlaneseq
        %v475 = vshrl.u32 %v474, 7
        %v476 = vsub.s32 %v473, %v475
        %v477 = vrot.slane %v449, %v476
        %v478 = vcombine.low %v456, %v463
        %v479 = vcombine.low %v470, %v477
        %v481 = vunpack.c.l.s4 1966171168
        %v482 = vunpack.c.0.s8 %v481
        %v483 = vlaneseq
        %v484 = vshrl.u32 %v483, 7
        %v485 = vsub.s32 %v482, %v484
        %v486 = vrot.slane %v478, %v485
        %v488 = vunpack.c.l.s4 1966171168
        %v489 = vunpack.c.0.s8 %v488
        %v490 = vlaneseq
        %v491 = vshrl.u32 %v490, 7
        %v492 = vsub.s32 %v489, %v491
        %v493 = vrot.slane %v479, %v492
        %v494 = vcombine.low %v486, %v493
        %v528 = vunpack.c.l.b16 %v389
        %v529 = vunpack.c.h.b16 %v389
        %v530 = vunpack.c.l.b16 %v390
        %v531 = vunpack.c.l.b16 %v391
        %v532 = vunpack.c.h.b16 %v391
        %v533 = vunpack.c.l.b16 %v392
        %v534 = vunpack.c.l.b16 %v393
        %v535 = vunpack.c.h.b16 %v393
        %v536 = vunpack.c.l.b16 %v394
        %v537 = vunpack.c.l.b16 %v395
        %v538 = vunpack.c.h.b16 %v395
        %v539 = vunpack.c.l.b16 %v396
        %v540 = vunpack.c.l.b16 %v397
        %v541 = vunpack.c.h.b16 %v397
        %v542 = vunpack.c.l.b16 %v398
        %v543 = vunpack.c.l.b16 %v399
        %v544 = vunpack.c.h.b16 %v399
        %v545 = vunpack.c.l.b16 %v400
        %v546 = vunpack.c.l.b16 %v401
        %v547 = vunpack.c.h.b16 %v401
        %v548 = vunpack.c.l.b16 %v402
        %v549 = vunpack.c.l.b16 %v403
        %v550 = vunpack.c.h.b16 %v403
        %v551 = vunpack.c.l.b16 %v404
        %v552 = vunpack.c.l.b16 %v405
        %v553 = vunpack.c.h.b16 %v405
        %v554 = vunpack.c.l.b16 %v406
        %v555 = vunpack.c.l.b16 %v407
        %v556 = vunpack.c.h.b16 %v407
        %v557 = vunpack.c.l.b16 %v408
        %v558 = vunpack.c.l.b16 %v409
        %v559 = vunpack.c.h.b16 %v409
        %v560 = vunpack.c.l.b16 %v410
        %v561 = vunpack.c.l.b16 %v411
        %v562 = vunpack.c.h.b16 %v411
        %v563 = vunpack.c.l.b16 %v412
        %v564 = vunpack.c.l.b16 %v413
        %v565 = vunpack.c.h.b16 %v413
        %v566 = vunpack.c.l.b16 %v414
        %v567 = vunpack.c.l.b16 %v415
        %v568 = vunpack.c.h.b16 %v415
        %v569 = vunpack.c.l.b16 %v416
        %v570 = vunpack.c.l.b16 %v417
        %v571 = vunpack.c.h.b16 %v417
        %v572 = vunpack.c.l.b16 %v418
        %v573 = vunpack.c.l.b16 %v419
        %v574 = vunpack.c.h.b16 %v419
        %v575 = vunpack.c.l.b16 %v420
        %v576 = vpack.c.b16 %v531, %v528
        %v577 = vpack.c.b16 %v532, %v529
        %v578 = vpack.c.b16 %v533, %v530
        %v579 = vpack.c.b16 %v537, %v534
        %v580 = vpack.c.b16 %v538, %v535
        %v581 = vpack.c.b16 %v539, %v536
        %v582 = vpack.c.b16 %v543, %v540
        %v583 = vpack.c.b16 %v544, %v541
        %v584 = vpack.c.b16 %v545, %v542
        %v585 = vpack.c.b16 %v549, %v546
        %v586 = vpack.c.b16 %v550, %v547
        %v587 = vpack.c.b16 %v551, %v548
        %v588 = vpack.c.b16 %v555, %v552
        %v589 = vpack.c.b16 %v556, %v553
        %v590 = vpack.c.b16 %v557, %v554
        %v591 = vpack.c.b16 %v561, %v558
        %v592 = vpack.c.b16 %v562, %v559
        %v593 = vpack.c.b16 %v563, %v560
        %v594 = vpack.c.b16 %v567, %v564
        %v595 = vpack.c.b16 %v568, %v565
        %v596 = vpack.c.b16 %v569, %v566
        %v597 = vpack.c.b16 %v573, %v570
        %v598 = vpack.c.b16 %v574, %v571
        %v599 = vpack.c.b16 %v575, %v572
        %624 = vmatprep.subr.bf16.mxu0 %v598
        %625 = vmatpush1.bf16.msra.mxu0 %v597
        %626 = vmatprep.subr.bf16.mxu0 %v595
        %627 = vmatpush1.bf16.msra.mxu0 %v594
        %628 = vmatprep.subr.bf16.mxu0 %v592
        %629 = vmatpush1.bf16.msra.mxu0 %v591
        %630 = vmatprep.subr.bf16.mxu0 %v589
        %631 = vmatpush1.bf16.msra.mxu0 %v588
        %632 = vmatprep.subr.bf16.mxu0 %v586
        %633 = vmatpush1.bf16.msra.mxu0 %v585
        %634 = vmatprep.subr.bf16.mxu0 %v583
        %635 = vmatpush1.bf16.msra.mxu0 %v582
        %636 = vmatprep.subr.bf16.mxu0 %v580
        %637 = vmatpush1.bf16.msra.mxu0 %v579
        %638 = vmatprep.subr.bf16.mxu0 %v577
        %639 = vmatpush1.bf16.msra.mxu0 %v576
        %640 = vmatprep.subr.bf16.mxu0 0
        %641 = vmatpush2.bf16.msra.mxu0 0
        %642 = vmatprep.subr.bf16.mxu0 0
        %643 = vmatpush2.bf16.msra.mxu0 0
        %644 = vmatprep.subr.bf16.mxu0 0
        %645 = vmatpush2.bf16.msra.mxu0 0
        %646 = vmatprep.subr.bf16.mxu0 0
        %647 = vmatpush2.bf16.msra.mxu0 0
        %648 = vmatprep.subr.bf16.mxu0 0
        %649 = vmatpush2.bf16.msra.mxu0 0
        %650 = vmatprep.subr.bf16.mxu0 0
        %651 = vmatpush2.bf16.msra.mxu0 0
        %652 = vmatprep.subr.bf16.mxu0 0
        %653 = vmatpush2.bf16.msra.mxu0 0
        %654 = vmatprep.subr.bf16.mxu0 0
        %655 = vmatpush2.bf16.msra.mxu0 0
        %656 = vmatprep.mubr.bf16.mxu0 0
        %657 = vmatmul.mubr.bf16.gmra.mxu0 %v494
        %v658 = vpop.f32.mrf.mxu0
        %v659 = vadd.f32 %v426, %v658
        %v660 = vpop.f32.mrf.mxu0
        %v661 = vadd.f32 %v430, %v660
        %v662 = vpop.f32.mrf.mxu0
        %v663 = vadd.f32 %v426, %v662
        %v664 = vpop.f32.mrf.mxu0
        %v665 = vadd.f32 %v430, %v664
        %666 = vdwg.mxu0
        %667 = vmatprep.subr.bf16.mxu0 0
        %668 = vmatpush1.bf16.msra.mxu0 %v599
        %669 = vmatprep.subr.bf16.mxu0 0
        %670 = vmatpush1.bf16.msra.mxu0 %v596
        %671 = vmatprep.subr.bf16.mxu0 0
        %672 = vmatpush1.bf16.msra.mxu0 %v593
        %673 = vmatprep.subr.bf16.mxu0 0
        %674 = vmatpush1.bf16.msra.mxu0 %v590
        %675 = vmatprep.subr.bf16.mxu0 0
        %676 = vmatpush1.bf16.msra.mxu0 %v587
        %677 = vmatprep.subr.bf16.mxu0 0
        %678 = vmatpush1.bf16.msra.mxu0 %v584
        %679 = vmatprep.subr.bf16.mxu0 0
        %680 = vmatpush1.bf16.msra.mxu0 %v581
        %681 = vmatprep.subr.bf16.mxu0 0
        %682 = vmatpush1.bf16.msra.mxu0 %v578
        %683 = vmatprep.subr.bf16.mxu0 0
        %684 = vmatpush2.bf16.msra.mxu0 0
        %685 = vmatprep.subr.bf16.mxu0 0
        %686 = vmatpush2.bf16.msra.mxu0 0
        %687 = vmatprep.subr.bf16.mxu0 0
        %688 = vmatpush2.bf16.msra.mxu0 0
        %689 = vmatprep.subr.bf16.mxu0 0
        %690 = vmatpush2.bf16.msra.mxu0 0
        %691 = vmatprep.subr.bf16.mxu0 0
        %692 = vmatpush2.bf16.msra.mxu0 0
        %693 = vmatprep.subr.bf16.mxu0 0
        %694 = vmatpush2.bf16.msra.mxu0 0
        %695 = vmatprep.subr.bf16.mxu0 0
        %696 = vmatpush2.bf16.msra.mxu0 0
        %697 = vmatprep.subr.bf16.mxu0 0
        %698 = vmatpush2.bf16.msra.mxu0 0
        %699 = vmatprep.mubr.bf16.mxu0 0
        %700 = vmatmul.mubr.bf16.gmra.mxu0 %v494
        %v701 = vpop.f32.mrf.mxu0
        %v702 = vadd.f32 %v434, %v701
        %v703 = vpop.f32.mrf.mxu0
        %v704 = vpop.f32.mrf.mxu0
        %v705 = vadd.f32 %v434, %v704
        %v706 = vpop.f32.mrf.mxu0
        %707 = vdwg.mxu0
        %v714 = vcombine.low %v659, %v661
        %v715 = vcombine.high %v659, %v661
        %v716 = vcombine.high %v702, %v702
        %v718 = vunpack.c.l.s4 1983009808
        %v719 = vunpack.c.0.s8 %v718
        %v720 = vlaneseq
        %v721 = vshrl.u32 %v720, 7
        %v722 = vsub.s32 %v719, %v721
        %v723 = vrot.slane %v714, %v722
        %v725 = vunpack.c.l.s4 1983009808
        %v726 = vunpack.c.0.s8 %v725
        %v727 = vlaneseq
        %v728 = vshrl.u32 %v727, 7
        %v729 = vsub.s32 %v726, %v728
        %v730 = vrot.slane %v715, %v729
        %v732 = vunpack.c.l.s4 1983009808
        %v733 = vunpack.c.0.s8 %v732
        %v734 = vlaneseq
        %v735 = vshrl.u32 %v734, 7
        %v736 = vsub.s32 %v733, %v735
        %v737 = vrot.slane %v702, %v736
        %v739 = vunpack.c.l.s4 1983009808
        %v740 = vunpack.c.0.s8 %v739
        %v741 = vlaneseq
        %v742 = vshrl.u32 %v741, 7
        %v743 = vsub.s32 %v740, %v742
        %v744 = vrot.slane %v716, %v743
        %v745 = vcombine.low %v723, %v737
        %v746 = vcombine.high %v723, %v737
        %v747 = vcombine.low %v730, %v744
        %v748 = vcombine.high %v730, %v744
        %v749 = vcombine.low %v663, %v665
        %v750 = vcombine.high %v663, %v665
        %v751 = vcombine.high %v705, %v705
        %v753 = vunpack.c.l.s4 1983009808
        %v754 = vunpack.c.0.s8 %v753
        %v755 = vlaneseq
        %v756 = vshrl.u32 %v755, 7
        %v757 = vsub.s32 %v754, %v756
        %v758 = vrot.slane %v749, %v757
        %v760 = vunpack.c.l.s4 1983009808
        %v761 = vunpack.c.0.s8 %v760
        %v762 = vlaneseq
        %v763 = vshrl.u32 %v762, 7
        %v764 = vsub.s32 %v761, %v763
        %v765 = vrot.slane %v750, %v764
        %v767 = vunpack.c.l.s4 1983009808
        %v768 = vunpack.c.0.s8 %v767
        %v769 = vlaneseq
        %v770 = vshrl.u32 %v769, 7
        %v771 = vsub.s32 %v768, %v770
        %v772 = vrot.slane %v705, %v771
        %v774 = vunpack.c.l.s4 1983009808
        %v775 = vunpack.c.0.s8 %v774
        %v776 = vlaneseq
        %v777 = vshrl.u32 %v776, 7
        %v778 = vsub.s32 %v775, %v777
        %v779 = vrot.slane %v751, %v778
        %v780 = vcombine.low %v758, %v772
        %v781 = vcombine.high %v758, %v772
        %v782 = vcombine.low %v765, %v779
        %v783 = vcombine.high %v765, %v779
        %792 = vst [vmem:[#allocation2] sm:$0x3f] %v745
        %793 = vst [vmem:[#allocation2 + $0x6] sm:$0x3f] %v746
        %794 = vst [vmem:[#allocation2 + $0xc] sm:$0x3f] %v747
        %795 = vst [vmem:[#allocation2 + $0x12] sm:$0x3f] %v748
        %796 = vst [vmem:[#allocation2 + $0x18] sm:$0x3f] %v780
        %797 = vst [vmem:[#allocation2 + $0x1e] sm:$0x3f] %v781
        %798 = vst [vmem:[#allocation2 + $0x24] sm:$0x3f] %v782
        %799 = vst [vmem:[#allocation2 + $0x2a] sm:$0x3f] %v783
        %v800 = vld [vmem:[%s315] sm:$0xff]
        %v801 = vld [vmem:[%s315 + $0x8] sm:$0xf]
        %v802 = vld [vmem:[%s315 + $0xc] sm:$0xff]
        %v803 = vld [vmem:[%s315 + $0x14] sm:$0xf]
        %v804 = vld [vmem:[%s315 + $0x18] sm:$0xff]
        %v805 = vld [vmem:[%s315 + $0x20] sm:$0xf]
        %v806 = vld [vmem:[%s315 + $0x24] sm:$0xff]
        %v807 = vld [vmem:[%s315 + $0x2c] sm:$0xf]
        %v808 = vld [vmem:[%s315 + $0x30] sm:$0xff]
        %v809 = vld [vmem:[%s315 + $0x38] sm:$0xf]
        %v810 = vld [vmem:[%s315 + $0x3c] sm:$0xff]
        %v811 = vld [vmem:[%s315 + $0x44] sm:$0xf]
        %v812 = vld [vmem:[%s315 + $0x48] sm:$0xff]
        %v813 = vld [vmem:[%s315 + $0x50] sm:$0xf]
        %v814 = vld [vmem:[%s315 + $0x54] sm:$0xff]
        %v815 = vld [vmem:[%s315 + $0x5c] sm:$0xf]
        %v816 = vld [vmem:[%s315 + $0x60] sm:$0xff]
        %v817 = vld [vmem:[%s315 + $0x68] sm:$0xf]
        %v818 = vld [vmem:[%s315 + $0x6c] sm:$0xff]
        %v819 = vld [vmem:[%s315 + $0x74] sm:$0xf]
        %v820 = vld [vmem:[%s315 + $0x78] sm:$0xff]
        %v821 = vld [vmem:[%s315 + $0x80] sm:$0xf]
        %v822 = vld [vmem:[%s315 + $0x84] sm:$0xff]
        %v823 = vld [vmem:[%s315 + $0x8c] sm:$0xf]
        %v824 = vld [vmem:[%s315 + $0x90] sm:$0xff]
        %v825 = vld [vmem:[%s315 + $0x98] sm:$0xf]
        %v826 = vld [vmem:[%s315 + $0x9c] sm:$0xff]
        %v827 = vld [vmem:[%s315 + $0xa4] sm:$0xf]
        %v828 = vld [vmem:[%s315 + $0xa8] sm:$0xff]
        %v829 = vld [vmem:[%s315 + $0xb0] sm:$0xf]
        %v830 = vld [vmem:[%s315 + $0xb4] sm:$0xff]
        %v831 = vld [vmem:[%s315 + $0xbc] sm:$0xf]
        %v832 = vld [vmem:[%s376] sm:$0x1]
        %v833 = vlaneseq
        %v834 = vshrl.u32 %v833, 7
        %vm835 = vcmp.eq.s32.totalorder %v834, 0
        %s836 = smul.u32 %s30, 128
        %s837 = sld [smem:[#allocation4 + %s836]]
        %v838 = vstv %s837
        %v839 = vsel %vm835, %v838, 0
        %vm840 = vcmp.eq.s32.totalorder %v834, 1
        %s841 = sadd.s32 %s836, 1
        %s842 = sld [smem:[#allocation4 + %s841]]
        %v843 = vstv %s842
        %v844 = vsel %vm840, %v843, %v839
        %v845 = vld [vmem:[%s369] sm:$0x3]
        %v846 = vld [vmem:[#allocation2] sm:$0x3f]
        %v847 = vpack.c.bf16 %v845, %v845
        %v880 = vunpack.c.l.b16 %v800
        %v881 = vunpack.c.h.b16 %v800
        %v882 = vunpack.c.l.b16 %v801
        %v883 = vunpack.c.l.b16 %v802
        %v884 = vunpack.c.h.b16 %v802
        %v885 = vunpack.c.l.b16 %v803
        %v886 = vunpack.c.l.b16 %v804
        %v887 = vunpack.c.h.b16 %v804
        %v888 = vunpack.c.l.b16 %v805
        %v889 = vunpack.c.l.b16 %v806
        %v890 = vunpack.c.h.b16 %v806
        %v891 = vunpack.c.l.b16 %v807
        %v892 = vunpack.c.l.b16 %v808
        %v893 = vunpack.c.h.b16 %v808
        %v894 = vunpack.c.l.b16 %v809
        %v895 = vunpack.c.l.b16 %v810
        %v896 = vunpack.c.h.b16 %v810
        %v897 = vunpack.c.l.b16 %v811
        %v898 = vunpack.c.l.b16 %v812
        %v899 = vunpack.c.h.b16 %v812
        %v900 = vunpack.c.l.b16 %v813
        %v901 = vunpack.c.l.b16 %v814
        %v902 = vunpack.c.h.b16 %v814
        %v903 = vunpack.c.l.b16 %v815
        %v904 = vunpack.c.l.b16 %v816
        %v905 = vunpack.c.h.b16 %v816
        %v906 = vunpack.c.l.b16 %v817
        %v907 = vunpack.c.l.b16 %v818
        %v908 = vunpack.c.h.b16 %v818
        %v909 = vunpack.c.l.b16 %v819
        %v910 = vunpack.c.l.b16 %v820
        %v911 = vunpack.c.h.b16 %v820
        %v912 = vunpack.c.l.b16 %v821
        %v913 = vunpack.c.l.b16 %v822
        %v914 = vunpack.c.h.b16 %v822
        %v915 = vunpack.c.l.b16 %v823
        %v916 = vunpack.c.l.b16 %v824
        %v917 = vunpack.c.h.b16 %v824
        %v918 = vunpack.c.l.b16 %v825
        %v919 = vunpack.c.l.b16 %v826
        %v920 = vunpack.c.h.b16 %v826
        %v921 = vunpack.c.l.b16 %v827
        %v922 = vunpack.c.l.b16 %v828
        %v923 = vunpack.c.h.b16 %v828
        %v924 = vunpack.c.l.b16 %v829
        %v925 = vunpack.c.l.b16 %v830
        %v926 = vunpack.c.h.b16 %v830
        %v927 = vunpack.c.l.b16 %v831
        %v928 = vpack.c.b16 %v883, %v880
        %v929 = vpack.c.b16 %v884, %v881
        %v930 = vpack.c.b16 %v885, %v882
        %v931 = vpack.c.b16 %v889, %v886
        %v932 = vpack.c.b16 %v890, %v887
        %v933 = vpack.c.b16 %v891, %v888
        %v934 = vpack.c.b16 %v895, %v892
        %v935 = vpack.c.b16 %v896, %v893
        %v936 = vpack.c.b16 %v897, %v894
        %v937 = vpack.c.b16 %v901, %v898
        %v938 = vpack.c.b16 %v902, %v899
        %v939 = vpack.c.b16 %v903, %v900
        %v940 = vpack.c.b16 %v907, %v904
        %v941 = vpack.c.b16 %v908, %v905
        %v942 = vpack.c.b16 %v909, %v906
        %v943 = vpack.c.b16 %v913, %v910
        %v944 = vpack.c.b16 %v914, %v911
        %v945 = vpack.c.b16 %v915, %v912
        %v946 = vpack.c.b16 %v919, %v916
        %v947 = vpack.c.b16 %v920, %v917
        %v948 = vpack.c.b16 %v921, %v918
        %v949 = vpack.c.b16 %v925, %v922
        %v950 = vpack.c.b16 %v926, %v923
        %v951 = vpack.c.b16 %v927, %v924
        %976 = vmatprep.subr.bf16.mxu0 %v950
        %977 = vmatpush1.bf16.msra.mxu0 %v949
        %978 = vmatprep.subr.bf16.mxu0 %v947
        %979 = vmatpush1.bf16.msra.mxu0 %v946
        %980 = vmatprep.subr.bf16.mxu0 %v944
        %981 = vmatpush1.bf16.msra.mxu0 %v943
        %982 = vmatprep.subr.bf16.mxu0 %v941
        %983 = vmatpush1.bf16.msra.mxu0 %v940
        %984 = vmatprep.subr.bf16.mxu0 %v938
        %985 = vmatpush1.bf16.msra.mxu0 %v937
        %986 = vmatprep.subr.bf16.mxu0 %v935
        %987 = vmatpush1.bf16.msra.mxu0 %v934
        %988 = vmatprep.subr.bf16.mxu0 %v932
        %989 = vmatpush1.bf16.msra.mxu0 %v931
        %990 = vmatprep.subr.bf16.mxu0 %v929
        %991 = vmatpush1.bf16.msra.mxu0 %v928
        %992 = vmatprep.subr.bf16.mxu0 0
        %993 = vmatpush2.bf16.msra.mxu0 0
        %994 = vmatprep.subr.bf16.mxu0 0
        %995 = vmatpush2.bf16.msra.mxu0 0
        %996 = vmatprep.subr.bf16.mxu0 0
        %997 = vmatpush2.bf16.msra.mxu0 0
        %998 = vmatprep.subr.bf16.mxu0 0
        %999 = vmatpush2.bf16.msra.mxu0 0
        %1000 = vmatprep.subr.bf16.mxu0 0
        %1001 = vmatpush2.bf16.msra.mxu0 0
        %1002 = vmatprep.subr.bf16.mxu0 0
        %1003 = vmatpush2.bf16.msra.mxu0 0
        %1004 = vmatprep.subr.bf16.mxu0 0
        %1005 = vmatpush2.bf16.msra.mxu0 0
        %1006 = vmatprep.subr.bf16.mxu0 0
        %1007 = vmatpush2.bf16.msra.mxu0 0
        %1008 = vmatprep.mubr.bf16.mxu0 0
        %1009 = vmatmul.mubr.bf16.gmra.mxu0 %v847
        %v1010 = vpop.f32.mrf.mxu0
        %v1011 = vadd.f32 0.0, %v1010
        %v1012 = vpop.f32.mrf.mxu0
        %v1013 = vadd.f32 0.0, %v1012
        %v1014 = vpop.f32.mrf.mxu0
        %v1015 = vpop.f32.mrf.mxu0
        %1016 = vdwg.mxu0
        %1017 = vmatprep.subr.bf16.mxu0 0
        %1018 = vmatpush1.bf16.msra.mxu0 %v951
        %1019 = vmatprep.subr.bf16.mxu0 0
        %1020 = vmatpush1.bf16.msra.mxu0 %v948
        %1021 = vmatprep.subr.bf16.mxu0 0
        %1022 = vmatpush1.bf16.msra.mxu0 %v945
        %1023 = vmatprep.subr.bf16.mxu0 0
        %1024 = vmatpush1.bf16.msra.mxu0 %v942
        %1025 = vmatprep.subr.bf16.mxu0 0
        %1026 = vmatpush1.bf16.msra.mxu0 %v939
        %1027 = vmatprep.subr.bf16.mxu0 0
        %1028 = vmatpush1.bf16.msra.mxu0 %v936
        %1029 = vmatprep.subr.bf16.mxu0 0
        %1030 = vmatpush1.bf16.msra.mxu0 %v933
        %1031 = vmatprep.subr.bf16.mxu0 0
        %1032 = vmatpush1.bf16.msra.mxu0 %v930
        %1033 = vmatprep.subr.bf16.mxu0 0
        %1034 = vmatpush2.bf16.msra.mxu0 0
        %1035 = vmatprep.subr.bf16.mxu0 0
        %1036 = vmatpush2.bf16.msra.mxu0 0
        %1037 = vmatprep.subr.bf16.mxu0 0
        %1038 = vmatpush2.bf16.msra.mxu0 0
        %1039 = vmatprep.subr.bf16.mxu0 0
        %1040 = vmatpush2.bf16.msra.mxu0 0
        %1041 = vmatprep.subr.bf16.mxu0 0
        %1042 = vmatpush2.bf16.msra.mxu0 0
        %1043 = vmatprep.subr.bf16.mxu0 0
        %1044 = vmatpush2.bf16.msra.mxu0 0
        %1045 = vmatprep.subr.bf16.mxu0 0
        %1046 = vmatpush2.bf16.msra.mxu0 0
        %1047 = vmatprep.subr.bf16.mxu0 0
        %1048 = vmatpush2.bf16.msra.mxu0 0
        %1049 = vmatprep.mubr.bf16.mxu0 0
        %1050 = vmatmul.mubr.bf16.gmra.mxu0 %v847
        %v1051 = vpop.f32.mrf.mxu0
        %v1052 = vadd.f32 0.0, %v1051
        %v1053 = vpop.f32.mrf.mxu0
        %v1054 = vpop.f32.mrf.mxu0
        %v1055 = vpop.f32.mrf.mxu0
        %1056 = vdwg.mxu0
        %v1057 = vadd.f32 %v846, %v1011
        %v1058 = vxor.u32 %v1057, 2147483648
        %v1059 = vmul.f32 %v1058, 1.442695
        %v1060 = vpow.pop %v1059
        %v1061 = vadd.f32 %v1060, 1.0
        %v1062 = vrcp.pop %v1061
        %v1063 = vmul.f32 1.0, %v1062
        %v1065 = vrot.slane %v846, 2
        %v1067 = vadd.f32 %v1065, %v1013
        %v1068 = vxor.u32 %v1067, 2147483648
        %v1069 = vmul.f32 %v1068, 1.442695
        %v1070 = vpow.pop %v1069
        %v1071 = vadd.f32 %v1070, 1.0
        %v1072 = vrcp.pop %v1071
        %v1073 = vmul.f32 1.0, %v1072
        %v1075 = vlaneseq
        %v1076 = vshrl.u32 %v1075, 7
        %v1077 = vsub.s32 0, %v1076
        %v1078 = vrot.slane %v832, %v1077
        %v1080 = vadd.f32 %v1052, %v1078
        %v1081 = vmul.f32 %v1063, %v1080
        %v1082 = vrot.slane %v846, 4
        %v1084 = vadd.f32 %v1082, %v1081
        %v1085 = vtanh.pop %v1084
        %v1086 = vsub.f32 1.0, %v1073
        %v1087 = vmul.f32 %v1086, %v1085
        %v1088 = vmul.f32 %v1073, %v845
        %v1089 = vadd.f32 %v1087, %v1088
        %vm1090 = vcmp.gt.s32.totalorder %v844, 0
        %v1091 = vsel %vm1090, 1, 0
        %vm1092 = vcmp.eq.s32.totalorder %v1091, 1
        %v1093 = vsel %vm1092, %v1089, %v845
        %s1094 = scalar_lea.vmem [#allocation2], 6
        %v1095 = vld [vmem:[%s1094] sm:$0x3f]
        %v1096 = vpack.c.bf16 %v1093, %v1093
        %1097 = vmatprep.subr.bf16.mxu0 %v950
        %1098 = vmatpush1.bf16.msra.mxu0 %v949
        %1099 = vmatprep.subr.bf16.mxu0 %v947
        %1100 = vmatpush1.bf16.msra.mxu0 %v946
        %1101 = vmatprep.subr.bf16.mxu0 %v944
        %1102 = vmatpush1.bf16.msra.mxu0 %v943
        %1103 = vmatprep.subr.bf16.mxu0 %v941
        %1104 = vmatpush1.bf16.msra.mxu0 %v940
        %1105 = vmatprep.subr.bf16.mxu0 %v938
        %1106 = vmatpush1.bf16.msra.mxu0 %v937
        %1107 = vmatprep.subr.bf16.mxu0 %v935
        %1108 = vmatpush1.bf16.msra.mxu0 %v934
        %1109 = vmatprep.subr.bf16.mxu0 %v932
        %1110 = vmatpush1.bf16.msra.mxu0 %v931
        %1111 = vmatprep.subr.bf16.mxu0 %v929
        %1112 = vmatpush1.bf16.msra.mxu0 %v928
        %1113 = vmatprep.subr.bf16.mxu0 0
        %1114 = vmatpush2.bf16.msra.mxu0 0
        %1115 = vmatprep.subr.bf16.mxu0 0
        %1116 = vmatpush2.bf16.msra.mxu0 0
        %1117 = vmatprep.subr.bf16.mxu0 0
        %1118 = vmatpush2.bf16.msra.mxu0 0
        %1119 = vmatprep.subr.bf16.mxu0 0
        %1120 = vmatpush2.bf16.msra.mxu0 0
        %1121 = vmatprep.subr.bf16.mxu0 0
        %1122 = vmatpush2.bf16.msra.mxu0 0
        %1123 = vmatprep.subr.bf16.mxu0 0
        %1124 = vmatpush2.bf16.msra.mxu0 0
        %1125 = vmatprep.subr.bf16.mxu0 0
        %1126 = vmatpush2.bf16.msra.mxu0 0
        %1127 = vmatprep.subr.bf16.mxu0 0
        %1128 = vmatpush2.bf16.msra.mxu0 0
        %1129 = vmatprep.mubr.bf16.mxu0 0
        %1130 = vmatmul.mubr.bf16.gmra.mxu0 %v1096
        %v1131 = vpop.f32.mrf.mxu0
        %v1132 = vadd.f32 0.0, %v1131
        %v1133 = vpop.f32.mrf.mxu0
        %v1134 = vadd.f32 0.0, %v1133
        %v1135 = vpop.f32.mrf.mxu0
        %v1136 = vpop.f32.mrf.mxu0
        %1137 = vdwg.mxu0
        %1138 = vmatprep.subr.bf16.mxu0 0
        %1139 = vmatpush1.bf16.msra.mxu0 %v951
        %1140 = vmatprep.subr.bf16.mxu0 0
        %1141 = vmatpush1.bf16.msra.mxu0 %v948
        %1142 = vmatprep.subr.bf16.mxu0 0
        %1143 = vmatpush1.bf16.msra.mxu0 %v945
        %1144 = vmatprep.subr.bf16.mxu0 0
        %1145 = vmatpush1.bf16.msra.mxu0 %v942
        %1146 = vmatprep.subr.bf16.mxu0 0
        %1147 = vmatpush1.bf16.msra.mxu0 %v939
        %1148 = vmatprep.subr.bf16.mxu0 0
        %1149 = vmatpush1.bf16.msra.mxu0 %v936
        %1150 = vmatprep.subr.bf16.mxu0 0
        %1151 = vmatpush1.bf16.msra.mxu0 %v933
        %1152 = vmatprep.subr.bf16.mxu0 0
        %1153 = vmatpush1.bf16.msra.mxu0 %v930
        %1154 = vmatprep.subr.bf16.mxu0 0
        %1155 = vmatpush2.bf16.msra.mxu0 0
        %1156 = vmatprep.subr.bf16.mxu0 0
        %1157 = vmatpush2.bf16.msra.mxu0 0
        %1158 = vmatprep.subr.bf16.mxu0 0
        %1159 = vmatpush2.bf16.msra.mxu0 0
        %1160 = vmatprep.subr.bf16.mxu0 0
        %1161 = vmatpush2.bf16.msra.mxu0 0
        %1162 = vmatprep.subr.bf16.mxu0 0
        %1163 = vmatpush2.bf16.msra.mxu0 0
        %1164 = vmatprep.subr.bf16.mxu0 0
        %1165 = vmatpush2.bf16.msra.mxu0 0
        %1166 = vmatprep.subr.bf16.mxu0 0
        %1167 = vmatpush2.bf16.msra.mxu0 0
        %1168 = vmatprep.subr.bf16.mxu0 0
        %1169 = vmatpush2.bf16.msra.mxu0 0
        %1170 = vmatprep.mubr.bf16.mxu0 0
        %1171 = vmatmul.mubr.bf16.gmra.mxu0 %v1096
        %v1172 = vpop.f32.mrf.mxu0
        %v1173 = vadd.f32 0.0, %v1172
        %v1174 = vpop.f32.mrf.mxu0
        %v1175 = vpop.f32.mrf.mxu0
        %v1176 = vpop.f32.mrf.mxu0
        %1177 = vdwg.mxu0
        %v1178 = vadd.f32 %v1095, %v1132
        %v1179 = vxor.u32 %v1178, 2147483648
        %v1180 = vmul.f32 %v1179, 1.442695
        %v1181 = vpow.pop %v1180
        %v1182 = vadd.f32 %v1181, 1.0
        %v1183 = vrcp.pop %v1182
        %v1184 = vmul.f32 1.0, %v1183
        %v1186 = vrot.slane %v1095, 2
        %v1188 = vadd.f32 %v1186, %v1134
        %v1189 = vxor.u32 %v1188, 2147483648
        %v1190 = vmul.f32 %v1189, 1.442695
        %v1191 = vpow.pop %v1190
        %v1192 = vadd.f32 %v1191, 1.0
        %v1193 = vrcp.pop %v1192
        %v1194 = vmul.f32 1.0, %v1193
        %v1195 = vadd.f32 %v1173, %v1078
        %v1196 = vmul.f32 %v1184, %v1195
        %v1197 = vrot.slane %v1095, 4
        %v1199 = vadd.f32 %v1197, %v1196
        %v1200 = vtanh.pop %v1199
        %v1201 = vsub.f32 1.0, %v1194
        %v1202 = vmul.f32 %v1201, %v1200
        %v1203 = vmul.f32 %v1194, %v1093
        %v1204 = vadd.f32 %v1202, %v1203
        %vm1205 = vcmp.gt.s32.totalorder %v844, 1
        %v1206 = vsel %vm1205, 1, 0
        %vm1207 = vcmp.eq.s32.totalorder %v1206, 1
        %v1208 = vsel %vm1207, %v1204, %v1093
        %s1209 = scalar_lea.vmem [#allocation2], 12
        %v1210 = vld [vmem:[%s1209] sm:$0x3f]
        %v1211 = vpack.c.bf16 %v1208, %v1208
        %1212 = vmatprep.subr.bf16.mxu0 %v950
        %1213 = vmatpush1.bf16.msra.mxu0 %v949
        %1214 = vmatprep.subr.bf16.mxu0 %v947
        %1215 = vmatpush1.bf16.msra.mxu0 %v946
        %1216 = vmatprep.subr.bf16.mxu0 %v944
        %1217 = vmatpush1.bf16.msra.mxu0 %v943
        %1218 = vmatprep.subr.bf16.mxu0 %v941
        %1219 = vmatpush1.bf16.msra.mxu0 %v940
        %1220 = vmatprep.subr.bf16.mxu0 %v938
        %1221 = vmatpush1.bf16.msra.mxu0 %v937
        %1222 = vmatprep.subr.bf16.mxu0 %v935
        %1223 = vmatpush1.bf16.msra.mxu0 %v934
        %1224 = vmatprep.subr.bf16.mxu0 %v932
        %1225 = vmatpush1.bf16.msra.mxu0 %v931
        %1226 = vmatprep.subr.bf16.mxu0 %v929
        %1227 = vmatpush1.bf16.msra.mxu0 %v928
        %1228 = vmatprep.subr.bf16.mxu0 0
        %1229 = vmatpush2.bf16.msra.mxu0 0
        %1230 = vmatprep.subr.bf16.mxu0 0
        %1231 = vmatpush2.bf16.msra.mxu0 0
        %1232 = vmatprep.subr.bf16.mxu0 0
        %1233 = vmatpush2.bf16.msra.mxu0 0
        %1234 = vmatprep.subr.bf16.mxu0 0
        %1235 = vmatpush2.bf16.msra.mxu0 0
        %1236 = vmatprep.subr.bf16.mxu0 0
        %1237 = vmatpush2.bf16.msra.mxu0 0
        %1238 = vmatprep.subr.bf16.mxu0 0
        %1239 = vmatpush2.bf16.msra.mxu0 0
        %1240 = vmatprep.subr.bf16.mxu0 0
        %1241 = vmatpush2.bf16.msra.mxu0 0
        %1242 = vmatprep.subr.bf16.mxu0 0
        %1243 = vmatpush2.bf16.msra.mxu0 0
        %1244 = vmatprep.mubr.bf16.mxu0 0
        %1245 = vmatmul.mubr.bf16.gmra.mxu0 %v1211
        %v1246 = vpop.f32.mrf.mxu0
        %v1247 = vadd.f32 0.0, %v1246
        %v1248 = vpop.f32.mrf.mxu0
        %v1249 = vadd.f32 0.0, %v1248
        %v1250 = vpop.f32.mrf.mxu0
        %v1251 = vpop.f32.mrf.mxu0
        %1252 = vdwg.mxu0
        %1253 = vmatprep.subr.bf16.mxu0 0
        %1254 = vmatpush1.bf16.msra.mxu0 %v951
        %1255 = vmatprep.subr.bf16.mxu0 0
        %1256 = vmatpush1.bf16.msra.mxu0 %v948
        %1257 = vmatprep.subr.bf16.mxu0 0
        %1258 = vmatpush1.bf16.msra.mxu0 %v945
        %1259 = vmatprep.subr.bf16.mxu0 0
        %1260 = vmatpush1.bf16.msra.mxu0 %v942
        %1261 = vmatprep.subr.bf16.mxu0 0
        %1262 = vmatpush1.bf16.msra.mxu0 %v939
        %1263 = vmatprep.subr.bf16.mxu0 0
        %1264 = vmatpush1.bf16.msra.mxu0 %v936
        %1265 = vmatprep.subr.bf16.mxu0 0
        %1266 = vmatpush1.bf16.msra.mxu0 %v933
        %1267 = vmatprep.subr.bf16.mxu0 0
        %1268 = vmatpush1.bf16.msra.mxu0 %v930
        %1269 = vmatprep.subr.bf16.mxu0 0
        %1270 = vmatpush2.bf16.msra.mxu0 0
        %1271 = vmatprep.subr.bf16.mxu0 0
        %1272 = vmatpush2.bf16.msra.mxu0 0
        %1273 = vmatprep.subr.bf16.mxu0 0
        %1274 = vmatpush2.bf16.msra.mxu0 0
        %1275 = vmatprep.subr.bf16.mxu0 0
        %1276 = vmatpush2.bf16.msra.mxu0 0
        %1277 = vmatprep.subr.bf16.mxu0 0
        %1278 = vmatpush2.bf16.msra.mxu0 0
        %1279 = vmatprep.subr.bf16.mxu0 0
        %1280 = vmatpush2.bf16.msra.mxu0 0
        %1281 = vmatprep.subr.bf16.mxu0 0
        %1282 = vmatpush2.bf16.msra.mxu0 0
        %1283 = vmatprep.subr.bf16.mxu0 0
        %1284 = vmatpush2.bf16.msra.mxu0 0
        %1285 = vmatprep.mubr.bf16.mxu0 0
        %1286 = vmatmul.mubr.bf16.gmra.mxu0 %v1211
        %v1287 = vpop.f32.mrf.mxu0
        %v1288 = vadd.f32 0.0, %v1287
        %v1289 = vpop.f32.mrf.mxu0
        %v1290 = vpop.f32.mrf.mxu0
        %v1291 = vpop.f32.mrf.mxu0
        %1292 = vdwg.mxu0
        %v1293 = vadd.f32 %v1210, %v1247
        %v1294 = vxor.u32 %v1293, 2147483648
        %v1295 = vmul.f32 %v1294, 1.442695
        %v1296 = vpow.pop %v1295
        %v1297 = vadd.f32 %v1296, 1.0
        %v1298 = vrcp.pop %v1297
        %v1299 = vmul.f32 1.0, %v1298
        %v1301 = vrot.slane %v1210, 2
        %v1303 = vadd.f32 %v1301, %v1249
        %v1304 = vxor.u32 %v1303, 2147483648
        %v1305 = vmul.f32 %v1304, 1.442695
        %v1306 = vpow.pop %v1305
        %v1307 = vadd.f32 %v1306, 1.0
        %v1308 = vrcp.pop %v1307
        %v1309 = vmul.f32 1.0, %v1308
        %v1310 = vadd.f32 %v1288, %v1078
        %v1311 = vmul.f32 %v1299, %v1310
        %v1312 = vrot.slane %v1210, 4
        %v1314 = vadd.f32 %v1312, %v1311
        %v1315 = vtanh.pop %v1314
        %v1316 = vsub.f32 1.0, %v1309
        %v1317 = vmul.f32 %v1316, %v1315
        %v1318 = vmul.f32 %v1309, %v1208
        %v1319 = vadd.f32 %v1317, %v1318
        %vm1320 = vcmp.gt.s32.totalorder %v844, 2
        %v1321 = vsel %vm1320, 1, 0
        %vm1322 = vcmp.eq.s32.totalorder %v1321, 1
        %v1323 = vsel %vm1322, %v1319, %v1208
        %s1324 = scalar_lea.vmem [#allocation2], 18
        %v1325 = vld [vmem:[%s1324] sm:$0x3f]
        %v1326 = vpack.c.bf16 %v1323, %v1323
        %1327 = vmatprep.subr.bf16.mxu0 %v950
        %1328 = vmatpush1.bf16.msra.mxu0 %v949
        %1329 = vmatprep.subr.bf16.mxu0 %v947
        %1330 = vmatpush1.bf16.msra.mxu0 %v946
        %1331 = vmatprep.subr.bf16.mxu0 %v944
        %1332 = vmatpush1.bf16.msra.mxu0 %v943
        %1333 = vmatprep.subr.bf16.mxu0 %v941
        %1334 = vmatpush1.bf16.msra.mxu0 %v940
        %1335 = vmatprep.subr.bf16.mxu0 %v938
        %1336 = vmatpush1.bf16.msra.mxu0 %v937
        %1337 = vmatprep.subr.bf16.mxu0 %v935
        %1338 = vmatpush1.bf16.msra.mxu0 %v934
        %1339 = vmatprep.subr.bf16.mxu0 %v932
        %1340 = vmatpush1.bf16.msra.mxu0 %v931
        %1341 = vmatprep.subr.bf16.mxu0 %v929
        %1342 = vmatpush1.bf16.msra.mxu0 %v928
        %1343 = vmatprep.subr.bf16.mxu0 0
        %1344 = vmatpush2.bf16.msra.mxu0 0
        %1345 = vmatprep.subr.bf16.mxu0 0
        %1346 = vmatpush2.bf16.msra.mxu0 0
        %1347 = vmatprep.subr.bf16.mxu0 0
        %1348 = vmatpush2.bf16.msra.mxu0 0
        %1349 = vmatprep.subr.bf16.mxu0 0
        %1350 = vmatpush2.bf16.msra.mxu0 0
        %1351 = vmatprep.subr.bf16.mxu0 0
        %1352 = vmatpush2.bf16.msra.mxu0 0
        %1353 = vmatprep.subr.bf16.mxu0 0
        %1354 = vmatpush2.bf16.msra.mxu0 0
        %1355 = vmatprep.subr.bf16.mxu0 0
        %1356 = vmatpush2.bf16.msra.mxu0 0
        %1357 = vmatprep.subr.bf16.mxu0 0
        %1358 = vmatpush2.bf16.msra.mxu0 0
        %1359 = vmatprep.mubr.bf16.mxu0 0
        %1360 = vmatmul.mubr.bf16.gmra.mxu0 %v1326
        %v1361 = vpop.f32.mrf.mxu0
        %v1362 = vadd.f32 0.0, %v1361
        %v1363 = vpop.f32.mrf.mxu0
        %v1364 = vadd.f32 0.0, %v1363
        %v1365 = vpop.f32.mrf.mxu0
        %v1366 = vpop.f32.mrf.mxu0
        %1367 = vdwg.mxu0
        %1368 = vmatprep.subr.bf16.mxu0 0
        %1369 = vmatpush1.bf16.msra.mxu0 %v951
        %1370 = vmatprep.subr.bf16.mxu0 0
        %1371 = vmatpush1.bf16.msra.mxu0 %v948
        %1372 = vmatprep.subr.bf16.mxu0 0
        %1373 = vmatpush1.bf16.msra.mxu0 %v945
        %1374 = vmatprep.subr.bf16.mxu0 0
        %1375 = vmatpush1.bf16.msra.mxu0 %v942
        %1376 = vmatprep.subr.bf16.mxu0 0
        %1377 = vmatpush1.bf16.msra.mxu0 %v939
        %1378 = vmatprep.subr.bf16.mxu0 0
        %1379 = vmatpush1.bf16.msra.mxu0 %v936
        %1380 = vmatprep.subr.bf16.mxu0 0
        %1381 = vmatpush1.bf16.msra.mxu0 %v933
        %1382 = vmatprep.subr.bf16.mxu0 0
        %1383 = vmatpush1.bf16.msra.mxu0 %v930
        %1384 = vmatprep.subr.bf16.mxu0 0
        %1385 = vmatpush2.bf16.msra.mxu0 0
        %1386 = vmatprep.subr.bf16.mxu0 0
        %1387 = vmatpush2.bf16.msra.mxu0 0
        %1388 = vmatprep.subr.bf16.mxu0 0
        %1389 = vmatpush2.bf16.msra.mxu0 0
        %1390 = vmatprep.subr.bf16.mxu0 0
        %1391 = vmatpush2.bf16.msra.mxu0 0
        %1392 = vmatprep.subr.bf16.mxu0 0
        %1393 = vmatpush2.bf16.msra.mxu0 0
        %1394 = vmatprep.subr.bf16.mxu0 0
        %1395 = vmatpush2.bf16.msra.mxu0 0
        %1396 = vmatprep.subr.bf16.mxu0 0
        %1397 = vmatpush2.bf16.msra.mxu0 0
        %1398 = vmatprep.subr.bf16.mxu0 0
        %1399 = vmatpush2.bf16.msra.mxu0 0
        %1400 = vmatprep.mubr.bf16.mxu0 0
        %1401 = vmatmul.mubr.bf16.gmra.mxu0 %v1326
        %v1402 = vpop.f32.mrf.mxu0
        %v1403 = vadd.f32 0.0, %v1402
        %v1404 = vpop.f32.mrf.mxu0
        %v1405 = vpop.f32.mrf.mxu0
        %v1406 = vpop.f32.mrf.mxu0
        %1407 = vdwg.mxu0
        %v1408 = vadd.f32 %v1325, %v1362
        %v1409 = vxor.u32 %v1408, 2147483648
        %v1410 = vmul.f32 %v1409, 1.442695
        %v1411 = vpow.pop %v1410
        %v1412 = vadd.f32 %v1411, 1.0
        %v1413 = vrcp.pop %v1412
        %v1414 = vmul.f32 1.0, %v1413
        %v1416 = vrot.slane %v1325, 2
        %v1418 = vadd.f32 %v1416, %v1364
        %v1419 = vxor.u32 %v1418, 2147483648
        %v1420 = vmul.f32 %v1419, 1.442695
        %v1421 = vpow.pop %v1420
        %v1422 = vadd.f32 %v1421, 1.0
        %v1423 = vrcp.pop %v1422
        %v1424 = vmul.f32 1.0, %v1423
        %v1425 = vadd.f32 %v1403, %v1078
        %v1426 = vmul.f32 %v1414, %v1425
        %v1427 = vrot.slane %v1325, 4
        %v1429 = vadd.f32 %v1427, %v1426
        %v1430 = vtanh.pop %v1429
        %v1431 = vsub.f32 1.0, %v1424
        %v1432 = vmul.f32 %v1431, %v1430
        %v1433 = vmul.f32 %v1424, %v1323
        %v1434 = vadd.f32 %v1432, %v1433
        %vm1435 = vcmp.gt.s32.totalorder %v844, 3
        %v1436 = vsel %vm1435, 1, 0
        %vm1437 = vcmp.eq.s32.totalorder %v1436, 1
        %v1438 = vsel %vm1437, %v1434, %v1323
        %s1439 = scalar_lea.vmem [#allocation2], 24
        %v1440 = vld [vmem:[%s1439] sm:$0x3f]
        %v1441 = vpack.c.bf16 %v1438, %v1438
        %1442 = vmatprep.subr.bf16.mxu0 %v950
        %1443 = vmatpush1.bf16.msra.mxu0 %v949
        %1444 = vmatprep.subr.bf16.mxu0 %v947
        %1445 = vmatpush1.bf16.msra.mxu0 %v946
        %1446 = vmatprep.subr.bf16.mxu0 %v944
        %1447 = vmatpush1.bf16.msra.mxu0 %v943
        %1448 = vmatprep.subr.bf16.mxu0 %v941
        %1449 = vmatpush1.bf16.msra.mxu0 %v940
        %1450 = vmatprep.subr.bf16.mxu0 %v938
        %1451 = vmatpush1.bf16.msra.mxu0 %v937
        %1452 = vmatprep.subr.bf16.mxu0 %v935
        %1453 = vmatpush1.bf16.msra.mxu0 %v934
        %1454 = vmatprep.subr.bf16.mxu0 %v932
        %1455 = vmatpush1.bf16.msra.mxu0 %v931
        %1456 = vmatprep.subr.bf16.mxu0 %v929
        %1457 = vmatpush1.bf16.msra.mxu0 %v928
        %1458 = vmatprep.subr.bf16.mxu0 0
        %1459 = vmatpush2.bf16.msra.mxu0 0
        %1460 = vmatprep.subr.bf16.mxu0 0
        %1461 = vmatpush2.bf16.msra.mxu0 0
        %1462 = vmatprep.subr.bf16.mxu0 0
        %1463 = vmatpush2.bf16.msra.mxu0 0
        %1464 = vmatprep.subr.bf16.mxu0 0
        %1465 = vmatpush2.bf16.msra.mxu0 0
        %1466 = vmatprep.subr.bf16.mxu0 0
        %1467 = vmatpush2.bf16.msra.mxu0 0
        %1468 = vmatprep.subr.bf16.mxu0 0
        %1469 = vmatpush2.bf16.msra.mxu0 0
        %1470 = vmatprep.subr.bf16.mxu0 0
        %1471 = vmatpush2.bf16.msra.mxu0 0
        %1472 = vmatprep.subr.bf16.mxu0 0
        %1473 = vmatpush2.bf16.msra.mxu0 0
        %1474 = vmatprep.mubr.bf16.mxu0 0
        %1475 = vmatmul.mubr.bf16.gmra.mxu0 %v1441
        %v1476 = vpop.f32.mrf.mxu0
        %v1477 = vadd.f32 0.0, %v1476
        %v1478 = vpop.f32.mrf.mxu0
        %v1479 = vadd.f32 0.0, %v1478
        %v1480 = vpop.f32.mrf.mxu0
        %v1481 = vpop.f32.mrf.mxu0
        %1482 = vdwg.mxu0
        %1483 = vmatprep.subr.bf16.mxu0 0
        %1484 = vmatpush1.bf16.msra.mxu0 %v951
        %1485 = vmatprep.subr.bf16.mxu0 0
        %1486 = vmatpush1.bf16.msra.mxu0 %v948
        %1487 = vmatprep.subr.bf16.mxu0 0
        %1488 = vmatpush1.bf16.msra.mxu0 %v945
        %1489 = vmatprep.subr.bf16.mxu0 0
        %1490 = vmatpush1.bf16.msra.mxu0 %v942
        %1491 = vmatprep.subr.bf16.mxu0 0
        %1492 = vmatpush1.bf16.msra.mxu0 %v939
        %1493 = vmatprep.subr.bf16.mxu0 0
        %1494 = vmatpush1.bf16.msra.mxu0 %v936
        %1495 = vmatprep.subr.bf16.mxu0 0
        %1496 = vmatpush1.bf16.msra.mxu0 %v933
        %1497 = vmatprep.subr.bf16.mxu0 0
        %1498 = vmatpush1.bf16.msra.mxu0 %v930
        %1499 = vmatprep.subr.bf16.mxu0 0
        %1500 = vmatpush2.bf16.msra.mxu0 0
        %1501 = vmatprep.subr.bf16.mxu0 0
        %1502 = vmatpush2.bf16.msra.mxu0 0
        %1503 = vmatprep.subr.bf16.mxu0 0
        %1504 = vmatpush2.bf16.msra.mxu0 0
        %1505 = vmatprep.subr.bf16.mxu0 0
        %1506 = vmatpush2.bf16.msra.mxu0 0
        %1507 = vmatprep.subr.bf16.mxu0 0
        %1508 = vmatpush2.bf16.msra.mxu0 0
        %1509 = vmatprep.subr.bf16.mxu0 0
        %1510 = vmatpush2.bf16.msra.mxu0 0
        %1511 = vmatprep.subr.bf16.mxu0 0
        %1512 = vmatpush2.bf16.msra.mxu0 0
        %1513 = vmatprep.subr.bf16.mxu0 0
        %1514 = vmatpush2.bf16.msra.mxu0 0
        %1515 = vmatprep.mubr.bf16.mxu0 0
        %1516 = vmatmul.mubr.bf16.gmra.mxu0 %v1441
        %v1517 = vpop.f32.mrf.mxu0
        %v1518 = vadd.f32 0.0, %v1517
        %v1519 = vpop.f32.mrf.mxu0
        %v1520 = vpop.f32.mrf.mxu0
        %v1521 = vpop.f32.mrf.mxu0
        %1522 = vdwg.mxu0
        %v1523 = vadd.f32 %v1440, %v1477
        %v1524 = vxor.u32 %v1523, 2147483648
        %v1525 = vmul.f32 %v1524, 1.442695
        %v1526 = vpow.pop %v1525
        %v1527 = vadd.f32 %v1526, 1.0
        %v1528 = vrcp.pop %v1527
        %v1529 = vmul.f32 1.0, %v1528
        %v1531 = vrot.slane %v1440, 2
        %v1533 = vadd.f32 %v1531, %v1479
        %v1534 = vxor.u32 %v1533, 2147483648
        %v1535 = vmul.f32 %v1534, 1.442695
        %v1536 = vpow.pop %v1535
        %v1537 = vadd.f32 %v1536, 1.0
        %v1538 = vrcp.pop %v1537
        %v1539 = vmul.f32 1.0, %v1538
        %v1540 = vadd.f32 %v1518, %v1078
        %v1541 = vmul.f32 %v1529, %v1540
        %v1542 = vrot.slane %v1440, 4
        %v1544 = vadd.f32 %v1542, %v1541
        %v1545 = vtanh.pop %v1544
        %v1546 = vsub.f32 1.0, %v1539
        %v1547 = vmul.f32 %v1546, %v1545
        %v1548 = vmul.f32 %v1539, %v1438
        %v1549 = vadd.f32 %v1547, %v1548
        %vm1550 = vcmp.gt.s32.totalorder %v844, 4
        %v1551 = vsel %vm1550, 1, 0
        %vm1552 = vcmp.eq.s32.totalorder %v1551, 1
        %v1553 = vsel %vm1552, %v1549, %v1438
        %s1554 = scalar_lea.vmem [#allocation2], 30
        %v1555 = vld [vmem:[%s1554] sm:$0x3f]
        %v1556 = vpack.c.bf16 %v1553, %v1553
        %1557 = vmatprep.subr.bf16.mxu0 %v950
        %1558 = vmatpush1.bf16.msra.mxu0 %v949
        %1559 = vmatprep.subr.bf16.mxu0 %v947
        %1560 = vmatpush1.bf16.msra.mxu0 %v946
        %1561 = vmatprep.subr.bf16.mxu0 %v944
        %1562 = vmatpush1.bf16.msra.mxu0 %v943
        %1563 = vmatprep.subr.bf16.mxu0 %v941
        %1564 = vmatpush1.bf16.msra.mxu0 %v940
        %1565 = vmatprep.subr.bf16.mxu0 %v938
        %1566 = vmatpush1.bf16.msra.mxu0 %v937
        %1567 = vmatprep.subr.bf16.mxu0 %v935
        %1568 = vmatpush1.bf16.msra.mxu0 %v934
        %1569 = vmatprep.subr.bf16.mxu0 %v932
        %1570 = vmatpush1.bf16.msra.mxu0 %v931
        %1571 = vmatprep.subr.bf16.mxu0 %v929
        %1572 = vmatpush1.bf16.msra.mxu0 %v928
        %1573 = vmatprep.subr.bf16.mxu0 0
        %1574 = vmatpush2.bf16.msra.mxu0 0
        %1575 = vmatprep.subr.bf16.mxu0 0
        %1576 = vmatpush2.bf16.msra.mxu0 0
        %1577 = vmatprep.subr.bf16.mxu0 0
        %1578 = vmatpush2.bf16.msra.mxu0 0
        %1579 = vmatprep.subr.bf16.mxu0 0
        %1580 = vmatpush2.bf16.msra.mxu0 0
        %1581 = vmatprep.subr.bf16.mxu0 0
        %1582 = vmatpush2.bf16.msra.mxu0 0
        %1583 = vmatprep.subr.bf16.mxu0 0
        %1584 = vmatpush2.bf16.msra.mxu0 0
        %1585 = vmatprep.subr.bf16.mxu0 0
        %1586 = vmatpush2.bf16.msra.mxu0 0
        %1587 = vmatprep.subr.bf16.mxu0 0
        %1588 = vmatpush2.bf16.msra.mxu0 0
        %1589 = vmatprep.mubr.bf16.mxu0 0
        %1590 = vmatmul.mubr.bf16.gmra.mxu0 %v1556
        %v1591 = vpop.f32.mrf.mxu0
        %v1592 = vadd.f32 0.0, %v1591
        %v1593 = vpop.f32.mrf.mxu0
        %v1594 = vadd.f32 0.0, %v1593
        %v1595 = vpop.f32.mrf.mxu0
        %v1596 = vpop.f32.mrf.mxu0
        %1597 = vdwg.mxu0
        %1598 = vmatprep.subr.bf16.mxu0 0
        %1599 = vmatpush1.bf16.msra.mxu0 %v951
        %1600 = vmatprep.subr.bf16.mxu0 0
        %1601 = vmatpush1.bf16.msra.mxu0 %v948
        %1602 = vmatprep.subr.bf16.mxu0 0
        %1603 = vmatpush1.bf16.msra.mxu0 %v945
        %1604 = vmatprep.subr.bf16.mxu0 0
        %1605 = vmatpush1.bf16.msra.mxu0 %v942
        %1606 = vmatprep.subr.bf16.mxu0 0
        %1607 = vmatpush1.bf16.msra.mxu0 %v939
        %1608 = vmatprep.subr.bf16.mxu0 0
        %1609 = vmatpush1.bf16.msra.mxu0 %v936
        %1610 = vmatprep.subr.bf16.mxu0 0
        %1611 = vmatpush1.bf16.msra.mxu0 %v933
        %1612 = vmatprep.subr.bf16.mxu0 0
        %1613 = vmatpush1.bf16.msra.mxu0 %v930
        %1614 = vmatprep.subr.bf16.mxu0 0
        %1615 = vmatpush2.bf16.msra.mxu0 0
        %1616 = vmatprep.subr.bf16.mxu0 0
        %1617 = vmatpush2.bf16.msra.mxu0 0
        %1618 = vmatprep.subr.bf16.mxu0 0
        %1619 = vmatpush2.bf16.msra.mxu0 0
        %1620 = vmatprep.subr.bf16.mxu0 0
        %1621 = vmatpush2.bf16.msra.mxu0 0
        %1622 = vmatprep.subr.bf16.mxu0 0
        %1623 = vmatpush2.bf16.msra.mxu0 0
        %1624 = vmatprep.subr.bf16.mxu0 0
        %1625 = vmatpush2.bf16.msra.mxu0 0
        %1626 = vmatprep.subr.bf16.mxu0 0
        %1627 = vmatpush2.bf16.msra.mxu0 0
        %1628 = vmatprep.subr.bf16.mxu0 0
        %1629 = vmatpush2.bf16.msra.mxu0 0
        %1630 = vmatprep.mubr.bf16.mxu0 0
        %1631 = vmatmul.mubr.bf16.gmra.mxu0 %v1556
        %v1632 = vpop.f32.mrf.mxu0
        %v1633 = vadd.f32 0.0, %v1632
        %v1634 = vpop.f32.mrf.mxu0
        %v1635 = vpop.f32.mrf.mxu0
        %v1636 = vpop.f32.mrf.mxu0
        %1637 = vdwg.mxu0
        %v1638 = vadd.f32 %v1555, %v1592
        %v1639 = vxor.u32 %v1638, 2147483648
        %v1640 = vmul.f32 %v1639, 1.442695
        %v1641 = vpow.pop %v1640
        %v1642 = vadd.f32 %v1641, 1.0
        %v1643 = vrcp.pop %v1642
        %v1644 = vmul.f32 1.0, %v1643
        %v1646 = vrot.slane %v1555, 2
        %v1648 = vadd.f32 %v1646, %v1594
        %v1649 = vxor.u32 %v1648, 2147483648
        %v1650 = vmul.f32 %v1649, 1.442695
        %v1651 = vpow.pop %v1650
        %v1652 = vadd.f32 %v1651, 1.0
        %v1653 = vrcp.pop %v1652
        %v1654 = vmul.f32 1.0, %v1653
        %v1655 = vadd.f32 %v1633, %v1078
        %v1656 = vmul.f32 %v1644, %v1655
        %v1657 = vrot.slane %v1555, 4
        %v1659 = vadd.f32 %v1657, %v1656
        %v1660 = vtanh.pop %v1659
        %v1661 = vsub.f32 1.0, %v1654
        %v1662 = vmul.f32 %v1661, %v1660
        %v1663 = vmul.f32 %v1654, %v1553
        %v1664 = vadd.f32 %v1662, %v1663
        %vm1665 = vcmp.gt.s32.totalorder %v844, 5
        %v1666 = vsel %vm1665, 1, 0
        %vm1667 = vcmp.eq.s32.totalorder %v1666, 1
        %v1668 = vsel %vm1667, %v1664, %v1553
        %s1669 = scalar_lea.vmem [#allocation2], 36
        %v1670 = vld [vmem:[%s1669] sm:$0x3f]
        %v1671 = vpack.c.bf16 %v1668, %v1668
        %1672 = vmatprep.subr.bf16.mxu0 %v950
        %1673 = vmatpush1.bf16.msra.mxu0 %v949
        %1674 = vmatprep.subr.bf16.mxu0 %v947
        %1675 = vmatpush1.bf16.msra.mxu0 %v946
        %1676 = vmatprep.subr.bf16.mxu0 %v944
        %1677 = vmatpush1.bf16.msra.mxu0 %v943
        %1678 = vmatprep.subr.bf16.mxu0 %v941
        %1679 = vmatpush1.bf16.msra.mxu0 %v940
        %1680 = vmatprep.subr.bf16.mxu0 %v938
        %1681 = vmatpush1.bf16.msra.mxu0 %v937
        %1682 = vmatprep.subr.bf16.mxu0 %v935
        %1683 = vmatpush1.bf16.msra.mxu0 %v934
        %1684 = vmatprep.subr.bf16.mxu0 %v932
        %1685 = vmatpush1.bf16.msra.mxu0 %v931
        %1686 = vmatprep.subr.bf16.mxu0 %v929
        %1687 = vmatpush1.bf16.msra.mxu0 %v928
        %1688 = vmatprep.subr.bf16.mxu0 0
        %1689 = vmatpush2.bf16.msra.mxu0 0
        %1690 = vmatprep.subr.bf16.mxu0 0
        %1691 = vmatpush2.bf16.msra.mxu0 0
        %1692 = vmatprep.subr.bf16.mxu0 0
        %1693 = vmatpush2.bf16.msra.mxu0 0
        %1694 = vmatprep.subr.bf16.mxu0 0
        %1695 = vmatpush2.bf16.msra.mxu0 0
        %1696 = vmatprep.subr.bf16.mxu0 0
        %1697 = vmatpush2.bf16.msra.mxu0 0
        %1698 = vmatprep.subr.bf16.mxu0 0
        %1699 = vmatpush2.bf16.msra.mxu0 0
        %1700 = vmatprep.subr.bf16.mxu0 0
        %1701 = vmatpush2.bf16.msra.mxu0 0
        %1702 = vmatprep.subr.bf16.mxu0 0
        %1703 = vmatpush2.bf16.msra.mxu0 0
        %1704 = vmatprep.mubr.bf16.mxu0 0
        %1705 = vmatmul.mubr.bf16.gmra.mxu0 %v1671
        %v1706 = vpop.f32.mrf.mxu0
        %v1707 = vadd.f32 0.0, %v1706
        %v1708 = vpop.f32.mrf.mxu0
        %v1709 = vadd.f32 0.0, %v1708
        %v1710 = vpop.f32.mrf.mxu0
        %v1711 = vpop.f32.mrf.mxu0
        %1712 = vdwg.mxu0
        %1713 = vmatprep.subr.bf16.mxu0 0
        %1714 = vmatpush1.bf16.msra.mxu0 %v951
        %1715 = vmatprep.subr.bf16.mxu0 0
        %1716 = vmatpush1.bf16.msra.mxu0 %v948
        %1717 = vmatprep.subr.bf16.mxu0 0
        %1718 = vmatpush1.bf16.msra.mxu0 %v945
        %1719 = vmatprep.subr.bf16.mxu0 0
        %1720 = vmatpush1.bf16.msra.mxu0 %v942
        %1721 = vmatprep.subr.bf16.mxu0 0
        %1722 = vmatpush1.bf16.msra.mxu0 %v939
        %1723 = vmatprep.subr.bf16.mxu0 0
        %1724 = vmatpush1.bf16.msra.mxu0 %v936
        %1725 = vmatprep.subr.bf16.mxu0 0
        %1726 = vmatpush1.bf16.msra.mxu0 %v933
        %1727 = vmatprep.subr.bf16.mxu0 0
        %1728 = vmatpush1.bf16.msra.mxu0 %v930
        %1729 = vmatprep.subr.bf16.mxu0 0
        %1730 = vmatpush2.bf16.msra.mxu0 0
        %1731 = vmatprep.subr.bf16.mxu0 0
        %1732 = vmatpush2.bf16.msra.mxu0 0
        %1733 = vmatprep.subr.bf16.mxu0 0
        %1734 = vmatpush2.bf16.msra.mxu0 0
        %1735 = vmatprep.subr.bf16.mxu0 0
        %1736 = vmatpush2.bf16.msra.mxu0 0
        %1737 = vmatprep.subr.bf16.mxu0 0
        %1738 = vmatpush2.bf16.msra.mxu0 0
        %1739 = vmatprep.subr.bf16.mxu0 0
        %1740 = vmatpush2.bf16.msra.mxu0 0
        %1741 = vmatprep.subr.bf16.mxu0 0
        %1742 = vmatpush2.bf16.msra.mxu0 0
        %1743 = vmatprep.subr.bf16.mxu0 0
        %1744 = vmatpush2.bf16.msra.mxu0 0
        %1745 = vmatprep.mubr.bf16.mxu0 0
        %1746 = vmatmul.mubr.bf16.gmra.mxu0 %v1671
        %v1747 = vpop.f32.mrf.mxu0
        %v1748 = vadd.f32 0.0, %v1747
        %v1749 = vpop.f32.mrf.mxu0
        %v1750 = vpop.f32.mrf.mxu0
        %v1751 = vpop.f32.mrf.mxu0
        %1752 = vdwg.mxu0
        %v1753 = vadd.f32 %v1670, %v1707
        %v1754 = vxor.u32 %v1753, 2147483648
        %v1755 = vmul.f32 %v1754, 1.442695
        %v1756 = vpow.pop %v1755
        %v1757 = vadd.f32 %v1756, 1.0
        %v1758 = vrcp.pop %v1757
        %v1759 = vmul.f32 1.0, %v1758
        %v1761 = vrot.slane %v1670, 2
        %v1763 = vadd.f32 %v1761, %v1709
        %v1764 = vxor.u32 %v1763, 2147483648
        %v1765 = vmul.f32 %v1764, 1.442695
        %v1766 = vpow.pop %v1765
        %v1767 = vadd.f32 %v1766, 1.0
        %v1768 = vrcp.pop %v1767
        %v1769 = vmul.f32 1.0, %v1768
        %v1770 = vadd.f32 %v1748, %v1078
        %v1771 = vmul.f32 %v1759, %v1770
        %v1772 = vrot.slane %v1670, 4
        %v1774 = vadd.f32 %v1772, %v1771
        %v1775 = vtanh.pop %v1774
        %v1776 = vsub.f32 1.0, %v1769
        %v1777 = vmul.f32 %v1776, %v1775
        %v1778 = vmul.f32 %v1769, %v1668
        %v1779 = vadd.f32 %v1777, %v1778
        %vm1780 = vcmp.gt.s32.totalorder %v844, 6
        %v1781 = vsel %vm1780, 1, 0
        %vm1782 = vcmp.eq.s32.totalorder %v1781, 1
        %v1783 = vsel %vm1782, %v1779, %v1668
        %s1784 = scalar_lea.vmem [#allocation2], 42
        %v1785 = vld [vmem:[%s1784] sm:$0x3f]
        %v1786 = vpack.c.bf16 %v1783, %v1783
        %1787 = vmatprep.subr.bf16.mxu0 %v950
        %1788 = vmatpush1.bf16.msra.mxu0 %v949
        %1789 = vmatprep.subr.bf16.mxu0 %v947
        %1790 = vmatpush1.bf16.msra.mxu0 %v946
        %1791 = vmatprep.subr.bf16.mxu0 %v944
        %1792 = vmatpush1.bf16.msra.mxu0 %v943
        %1793 = vmatprep.subr.bf16.mxu0 %v941
        %1794 = vmatpush1.bf16.msra.mxu0 %v940
        %1795 = vmatprep.subr.bf16.mxu0 %v938
        %1796 = vmatpush1.bf16.msra.mxu0 %v937
        %1797 = vmatprep.subr.bf16.mxu0 %v935
        %1798 = vmatpush1.bf16.msra.mxu0 %v934
        %1799 = vmatprep.subr.bf16.mxu0 %v932
        %1800 = vmatpush1.bf16.msra.mxu0 %v931
        %1801 = vmatprep.subr.bf16.mxu0 %v929
        %1802 = vmatpush1.bf16.msra.mxu0 %v928
        %1803 = vmatprep.subr.bf16.mxu0 0
        %1804 = vmatpush2.bf16.msra.mxu0 0
        %1805 = vmatprep.subr.bf16.mxu0 0
        %1806 = vmatpush2.bf16.msra.mxu0 0
        %1807 = vmatprep.subr.bf16.mxu0 0
        %1808 = vmatpush2.bf16.msra.mxu0 0
        %1809 = vmatprep.subr.bf16.mxu0 0
        %1810 = vmatpush2.bf16.msra.mxu0 0
        %1811 = vmatprep.subr.bf16.mxu0 0
        %1812 = vmatpush2.bf16.msra.mxu0 0
        %1813 = vmatprep.subr.bf16.mxu0 0
        %1814 = vmatpush2.bf16.msra.mxu0 0
        %1815 = vmatprep.subr.bf16.mxu0 0
        %1816 = vmatpush2.bf16.msra.mxu0 0
        %1817 = vmatprep.subr.bf16.mxu0 0
        %1818 = vmatpush2.bf16.msra.mxu0 0
        %1819 = vmatprep.mubr.bf16.mxu0 0
        %1820 = vmatmul.mubr.bf16.gmra.mxu0 %v1786
        %v1821 = vpop.f32.mrf.mxu0
        %v1822 = vadd.f32 0.0, %v1821
        %v1823 = vpop.f32.mrf.mxu0
        %v1824 = vadd.f32 0.0, %v1823
        %v1825 = vpop.f32.mrf.mxu0
        %v1826 = vpop.f32.mrf.mxu0
        %1827 = vdwg.mxu0
        %1828 = vmatprep.subr.bf16.mxu0 0
        %1829 = vmatpush1.bf16.msra.mxu0 %v951
        %1830 = vmatprep.subr.bf16.mxu0 0
        %1831 = vmatpush1.bf16.msra.mxu0 %v948
        %1832 = vmatprep.subr.bf16.mxu0 0
        %1833 = vmatpush1.bf16.msra.mxu0 %v945
        %1834 = vmatprep.subr.bf16.mxu0 0
        %1835 = vmatpush1.bf16.msra.mxu0 %v942
        %1836 = vmatprep.subr.bf16.mxu0 0
        %1837 = vmatpush1.bf16.msra.mxu0 %v939
        %1838 = vmatprep.subr.bf16.mxu0 0
        %1839 = vmatpush1.bf16.msra.mxu0 %v936
        %1840 = vmatprep.subr.bf16.mxu0 0
        %1841 = vmatpush1.bf16.msra.mxu0 %v933
        %1842 = vmatprep.subr.bf16.mxu0 0
        %1843 = vmatpush1.bf16.msra.mxu0 %v930
        %1844 = vmatprep.subr.bf16.mxu0 0
        %1845 = vmatpush2.bf16.msra.mxu0 0
        %1846 = vmatprep.subr.bf16.mxu0 0
        %1847 = vmatpush2.bf16.msra.mxu0 0
        %1848 = vmatprep.subr.bf16.mxu0 0
        %1849 = vmatpush2.bf16.msra.mxu0 0
        %1850 = vmatprep.subr.bf16.mxu0 0
        %1851 = vmatpush2.bf16.msra.mxu0 0
        %1852 = vmatprep.subr.bf16.mxu0 0
        %1853 = vmatpush2.bf16.msra.mxu0 0
        %1854 = vmatprep.subr.bf16.mxu0 0
        %1855 = vmatpush2.bf16.msra.mxu0 0
        %1856 = vmatprep.subr.bf16.mxu0 0
        %1857 = vmatpush2.bf16.msra.mxu0 0
        %1858 = vmatprep.subr.bf16.mxu0 0
        %1859 = vmatpush2.bf16.msra.mxu0 0
        %1860 = vmatprep.mubr.bf16.mxu0 0
        %1861 = vmatmul.mubr.bf16.gmra.mxu0 %v1786
        %v1862 = vpop.f32.mrf.mxu0
        %v1863 = vadd.f32 0.0, %v1862
        %v1864 = vpop.f32.mrf.mxu0
        %v1865 = vpop.f32.mrf.mxu0
        %v1866 = vpop.f32.mrf.mxu0
        %1867 = vdwg.mxu0
        %v1868 = vadd.f32 %v1785, %v1822
        %v1869 = vxor.u32 %v1868, 2147483648
        %v1870 = vmul.f32 %v1869, 1.442695
        %v1871 = vpow.pop %v1870
        %v1872 = vadd.f32 %v1871, 1.0
        %v1873 = vrcp.pop %v1872
        %v1874 = vmul.f32 1.0, %v1873
        %v1876 = vrot.slane %v1785, 2
        %v1878 = vadd.f32 %v1876, %v1824
        %v1879 = vxor.u32 %v1878, 2147483648
        %v1880 = vmul.f32 %v1879, 1.442695
        %v1881 = vpow.pop %v1880
        %v1882 = vadd.f32 %v1881, 1.0
        %v1883 = vrcp.pop %v1882
        %v1884 = vmul.f32 1.0, %v1883
        %v1885 = vadd.f32 %v1863, %v1078
        %v1886 = vmul.f32 %v1874, %v1885
        %v1887 = vrot.slane %v1785, 4
        %v1889 = vadd.f32 %v1887, %v1886
        %v1890 = vtanh.pop %v1889
        %v1891 = vsub.f32 1.0, %v1884
        %v1892 = vmul.f32 %v1891, %v1890
        %v1893 = vmul.f32 %v1884, %v1783
        %v1894 = vadd.f32 %v1892, %v1893
        %vm1895 = vcmp.gt.s32.totalorder %v844, 7
        %v1896 = vsel %vm1895, 1, 0
        %vm1897 = vcmp.eq.s32.totalorder %v1896, 1
        %v1898 = vsel %vm1897, %v1894, %v1783
        %v1899 = vpack.c.bf16 %v1898, %v1898
        %1900 = vst [vmem:[%s379] sm:$0x1] %v1899
        %p1901 = scmp.lt.s32.totalorder %s30, 4
        %s1902 = scalar_select %p1901, %s30, 4
        %s1903 = scalar_lea.vmem %s7, %s1902
        // Predicated region
        $region53: #{action_drqa_forward.2} parent=43 // pred_check
          %p1904 = pneg %p204
        $region54: #{action_drqa_forward.2} parent=43 // pred_check_branch
          %1906 = sbr.rel (%p1904) target = $region56
        $region55: #{action_drqa_forward.2} parent=43 // pred_region
          _
        $region56: #{action_drqa_forward.2} parent=43 // pred_fallthru
          _
      $region44: #{action_drqa_forward.2} parent=5 // pred_fallthru
        _
      %p1907 = scmp.le.s32.totalorder 2, %s25
      // Predicated region
      $region57: #{action_drqa_forward.2} parent=5 // pred_check
        %p1908 = pneg %p1907
      $region58: #{action_drqa_forward.2} parent=5 // pred_check_branch
        %1910 = sbr.rel (%p1908) target = $region60
      $region59: #{action_drqa_forward.2} parent=5 // pred_region
        %s1911 = ssub.s32 %s25, 2
        // Predicated region
        $region61: #{action_drqa_forward.2} parent=59 // pred_check
          %p1912 = pneg %p210
        $region62: #{action_drqa_forward.2} parent=59 // pred_check_branch
          %1914 = sbr.rel (%p1912) target = $region64
        $region63: #{action_drqa_forward.2} parent=59 // pred_region
          %p1915 = scmp.lt.s32.totalorder %s31, 4
          %s1916 = scalar_select %p1915, %s31, 4
          %s1917 = scalar_lea.vmem %s7, %s1916
        $region64: #{action_drqa_forward.2} parent=59 // pred_fallthru
          _
      $region60: #{action_drqa_forward.2} parent=5 // pred_fallthru
        _
    $region6: #{action_drqa_forward.2} parent=1 // loop_footer
      %s29 = sadd.s32 1, %s25
    $region7: #{action_drqa_forward.2} parent=1 // loop_footer_branch
      %24 = sbr.rel target = $region3
    $region8: #{action_drqa_forward.2} parent=1 // loop_exit
      _
    %1918 = vsyncpa [#allocation6], 1
    %s1919 = scalar_lea.sflag [#allocation6], 1
    %1920 = vsyncpa %s1919, 1
    %1921 = vsyncpa [#allocation8], 1
    %s1922 = scalar_lea.sflag [#allocation8], 1
    %1923 = vsyncpa %s1922, 1

</llo_original>
